<compile_context>
chip_gen: v7x
topology: tpu7x:2x2x1
jax: 0.10.0
libtpu: 0.0.40
codegen_flags: <defaults>
</compile_context>

<pallas_src>
import functools

import jax
import jax.numpy as jnp
from jax import lax
from jax.experimental import pallas as pl
from jax.experimental.pallas import tpu as pltpu


MASK_VALUE = -1e30  # finite "minus infinity": no NaN hazard under tiling


# ---------------------------------------------------------------------------
# Kernel 1: fused QKV projection — each token projected exactly once.
# ---------------------------------------------------------------------------
def qkv_proj_kernel(x_ref, w_ref, q_ref, k_ref, v_ref):
    h = q_ref.shape[2]
    qkv = jnp.dot(x_ref[0], w_ref[...], preferred_element_type=jnp.float32)
    q_ref[0] = qkv[:, :h].astype(q_ref.dtype)          # already scaled by C**-0.5
    k_ref[0] = qkv[:, h:2 * h].astype(k_ref.dtype)
    v_ref[0] = qkv[:, 2 * h:].astype(v_ref.dtype)


# ---------------------------------------------------------------------------
# Kernel 2: causal flash attention over precomputed q/k/v (online softmax).
# ---------------------------------------------------------------------------
def flash_head_kernel(q_ref, k_ref, v_ref, o_ref, m_scr, l_scr, acc_scr):
    qi = pl.program_id(1)
    ki = pl.program_id(2)
    nk = pl.num_programs(2)
    tq = q_ref.shape[1]
    tk = k_ref.shape[1]

    @pl.when(ki == 0)
    def _init():
        m_scr[...] = jnp.full_like(m_scr, MASK_VALUE)
        l_scr[...] = jnp.zeros_like(l_scr)
        acc_scr[...] = jnp.zeros_like(acc_scr)

    def scores():
        # q is pre-scaled (C**-0.5 folded into Wq); contract head dims of q and
        # k directly so no explicit k.T relayout is needed.
        return lax.dot_general(
            q_ref[0], k_ref[0],
            dimension_numbers=(((1,), (1,)), ((), ())),
            preferred_element_type=jnp.float32)

    def online_softmax_update(s):
        m_prev = m_scr[...]
        m_new = jnp.maximum(m_prev, jnp.max(s, axis=-1, keepdims=True))
        alpha = jnp.exp(m_prev - m_new)
        p = jnp.exp(s - m_new)
        l_scr[...] = alpha * l_scr[...] + jnp.sum(p, axis=-1, keepdims=True)
        acc_scr[...] = alpha * acc_scr[...] + jnp.dot(
            p.astype(v_ref.dtype), v_ref[0], preferred_element_type=jnp.float32)
        m_scr[...] = m_new

    # Fully-below-diagonal tiles: no masking work at all.
    @pl.when(ki < qi)
    def _full_tile():
        online_softmax_update(scores())

    # Diagonal tile: local triangular mask (tq == tk enforced by the wrapper,
    # so local row/col indices suffice and every row has >=1 valid column).
    @pl.when(ki == qi)
    def _diag_tile():
        s = scores()
        r = lax.broadcasted_iota(jnp.int32, (tq, tk), 0)
        c = lax.broadcasted_iota(jnp.int32, (tq, tk), 1)
        online_softmax_update(jnp.where(c <= r, s, MASK_VALUE))

    # Tiles with ki > qi are fully masked: compute skipped, and their k/v
    # index_map is clamped so no DMA is issued either.

    @pl.when(ki == nk - 1)
    def _finalize():
        # Exact divide: runs once per q tile, negligible cost, bit-closer parity.
        o_ref[0] = (acc_scr[...] / l_scr[...]).astype(o_ref.dtype)


# ---------------------------------------------------------------------------
# Host-side wrappers
# ---------------------------------------------------------------------------
def prepare_head_weights(wq, wk, wv, dtype=None):
    """One-time prep: PyTorch (H, C) weights -> fused (C, 3H) [Wq*scale|Wk|Wv]."""
    wq = jnp.asarray(wq)
    wk = jnp.asarray(wk)
    wv = jnp.asarray(wv)
    if dtype is None:
        dtype = wq.dtype
    c = wq.shape[1]
    scale = c ** -0.5  # matches the reference: scales by n_embd, not head_size
    w_qkv = jnp.concatenate([wq.T * scale, wk.T, wv.T], axis=1)  # (C, 3H)
    return w_qkv.astype(dtype)


@functools.partial(jax.jit, static_argnames=("block_t",))
def head_forward(x, w_qkv, *, block_t=256):
    """x: (B, T, C); w_qkv: (C, 3H) from prepare_head_weights."""
    B, T, C = x.shape
    h3 = w_qkv.shape[1]
    H = h3 // 3

    tt = min(block_t, T)            # tq == tk == tt (required for the diagonal-tile mask)
    assert T % tt == 0, "T must be divisible by the tile size"
    nt = T // tt

    # ---- pass 1: QKV projection (each token projected once) ----------------
    q, k, v = pl.pallas_call(
        qkv_proj_kernel,
        out_shape=(
            jax.ShapeDtypeStruct((B, T, H), x.dtype),
            jax.ShapeDtypeStruct((B, T, H), x.dtype),
            jax.ShapeDtypeStruct((B, T, H), x.dtype),
        ),
        grid_spec=pltpu.PrefetchScalarGridSpec(
            num_scalar_prefetch=0,
            grid=(B, nt),
            in_specs=[
                pl.BlockSpec((1, tt, C), lambda b, t: (b, t, 0)),
                pl.BlockSpec((C, h3), lambda b, t: (0, 0)),
            ],
            out_specs=[
                pl.BlockSpec((1, tt, H), lambda b, t: (b, t, 0)),
                pl.BlockSpec((1, tt, H), lambda b, t: (b, t, 0)),
                pl.BlockSpec((1, tt, H), lambda b, t: (b, t, 0)),
            ],
        ),
        compiler_params=pltpu.CompilerParams(
            dimension_semantics=("parallel", "parallel")),
    )(x, w_qkv)

    # ---- pass 2: causal flash attention -------------------------------------
    # Clamp the kv block index so tiles above the causal diagonal re-use the
    # previous block (no DMA issued for skipped iterations).
    kv_idx = lambda b, qi, ki: (b, jnp.minimum(ki, qi), 0)
    out = pl.pallas_call(
        flash_head_kernel,
        out_shape=jax.ShapeDtypeStruct((B, T, H), x.dtype),
        grid_spec=pltpu.PrefetchScalarGridSpec(
            num_scalar_prefetch=0,
            grid=(B, nt, nt),
            in_specs=[
                pl.BlockSpec((1, tt, H), lambda b, qi, ki: (b, qi, 0)),  # q tile
                pl.BlockSpec((1, tt, H), kv_idx),                        # k tile
                pl.BlockSpec((1, tt, H), kv_idx),                        # v tile
            ],
            out_specs=pl.BlockSpec((1, tt, H), lambda b, qi, ki: (b, qi, 0)),
            scratch_shapes=[
                pltpu.VMEM((tt, 1), jnp.float32),   # running max
                pltpu.VMEM((tt, 1), jnp.float32),   # running denom
                pltpu.VMEM((tt, H), jnp.float32),   # output accumulator
            ],
        ),
        compiler_params=pltpu.CompilerParams(
            dimension_semantics=("parallel", "parallel", "arbitrary")),
    )(q, k, v)
    return out


def head_reference(x, wq, wk, wv):
    """Pure-JAX reference mirroring the PyTorch forward (eval mode), high precision."""
    B, T, C = x.shape
    hi = lax.Precision.HIGHEST
    q = jnp.einsum("btc,hc->bth", x, wq, precision=hi)
    k = jnp.einsum("btc,hc->bth", x, wk, precision=hi)
    v = jnp.einsum("btc,hc->bth", x, wv, precision=hi)
    wei = jnp.einsum("bqh,bkh->bqk", q, k, precision=hi) * (C ** -0.5)
    mask = jnp.tril(jnp.ones((T, T), dtype=bool))
    wei = jnp.where(mask, wei, -jnp.inf)
    wei = jax.nn.softmax(wei, axis=-1)
    return jnp.einsum("bqk,bkh->bqh", wei, v, precision=hi)


if __name__ == "__main__":
    # Small shapes consistent with the module: block_size=8, n_embd=32, head_size=16
    B, T, C, H = 2, 8, 32, 16

    key = jax.random.PRNGKey(0)
    kx, kq, kk, kvk = jax.random.split(key, 4)

    x = jax.random.normal(kx, (B, T, C), dtype=jnp.float32)
    # nn.Linear(n_embd, head_size, bias=False) weight shape: (head_size, n_embd)
    wq = jax.random.normal(kq, (H, C), dtype=jnp.float32) * (C ** -0.5)
    wk = jax.random.normal(kk, (H, C), dtype=jnp.float32) * (C ** -0.5)
    wv = jax.random.normal(kvk, (H, C), dtype=jnp.float32) * (C ** -0.5)

    ref = head_reference(x, wq, wk, wv)

    # f32 path
    w_qkv = prepare_head_weights(wq, wk, wv)          # one-time layout/scale prep
    out = jax.block_until_ready(head_forward(x, w_qkv))
    assert out.shape == (B, T, H)
    assert jnp.allclose(out, ref, atol=2e-2, rtol=2e-2), "f32 mismatch vs JAX reference"

    # bf16 path: bf16 MXU operands, f32 accumulation
    w_qkv_bf = prepare_head_weights(wq, wk, wv, dtype=jnp.bfloat16)
    out_bf = jax.block_until_ready(head_forward(x.astype(jnp.bfloat16), w_qkv_bf))
    assert out_bf.shape == (B, T, H)
    assert jnp.allclose(out_bf.astype(jnp.float32), ref, atol=2e-1, rtol=2e-1), \
        "bf16 mismatch vs JAX reference"

    print("KERNEL_OK")
</pallas_src>

<mosaic_0001>
module attributes {stable_mosaic.version = 11 : i64} {
  func.func @flash_head_kernel(%arg0: i32, %arg1: i32, %arg2: i32, %arg3: memref<1x8x16xf32, #tpu.memory_space<vmem>>, %arg4: memref<1x8x16xf32, #tpu.memory_space<vmem>>, %arg5: memref<1x8x16xf32, #tpu.memory_space<vmem>>, %arg6: memref<1x8x16xf32, #tpu.memory_space<vmem>>, %arg7: memref<8x1xf32, #tpu.memory_space<vmem>>, %arg8: memref<8x1xf32, #tpu.memory_space<vmem>>, %arg9: memref<8x16xf32, #tpu.memory_space<vmem>>) attributes {dimension_semantics = [#tpu.dimension_semantics<parallel>, #tpu.dimension_semantics<parallel>, #tpu.dimension_semantics<arbitrary>], iteration_bounds = array<i64: 2, 1, 1>, scalar_prefetch = 0 : i64, scratch_operands = 3 : i64, tpu.core_type = #tpu.core_type<tc>, window_params = [{transform_indices = @transform_0, window_bounds = array<i64: 1, 8, 16>}, {transform_indices = @transform_1, window_bounds = array<i64: 1, 8, 16>}, {transform_indices = @transform_2, window_bounds = array<i64: 1, 8, 16>}, {transform_indices = @transform_3, window_bounds = array<i64: 1, 8, 16>}]} {
    %c0_i32 = arith.constant 0 : i32
    %0 = arith.cmpi eq, %arg2, %c0_i32 : i32
    %1 = arith.extui %0 : i1 to i32
    %c0_i32_0 = arith.constant 0 : i32
    %2 = arith.cmpi ne, %1, %c0_i32_0 : i32
    scf.if %2 {
      %cst = arith.constant -1.000000e+30 : f32
      %12 = vector.broadcast %cst : f32 to vector<8x1xf32>
      %c0 = arith.constant 0 : index
      %c0_5 = arith.constant 0 : index
      %13 = vector.load %arg7[%c0, %c0_5] : memref<8x1xf32, #tpu.memory_space<vmem>>, vector<8x1xf32>
      tpu.vector_store %arg7[%c0, %c0_5], %12 {strides = array<i32>} : memref<8x1xf32, #tpu.memory_space<vmem>>, vector<8x1xf32>,
      %cst_6 = arith.constant 0.000000e+00 : f32
      %14 = vector.broadcast %cst_6 : f32 to vector<8x1xf32>
      %c0_7 = arith.constant 0 : index
      %c0_8 = arith.constant 0 : index
      %15 = vector.load %arg8[%c0_7, %c0_8] : memref<8x1xf32, #tpu.memory_space<vmem>>, vector<8x1xf32>
      tpu.vector_store %arg8[%c0_7, %c0_8], %14 {strides = array<i32>} : memref<8x1xf32, #tpu.memory_space<vmem>>, vector<8x1xf32>,
      %cst_9 = arith.constant 0.000000e+00 : f32
      %16 = vector.broadcast %cst_9 : f32 to vector<8x16xf32>
      %c0_10 = arith.constant 0 : index
      %c0_11 = arith.constant 0 : index
      %17 = vector.load %arg9[%c0_10, %c0_11] : memref<8x16xf32, #tpu.memory_space<vmem>>, vector<8x16xf32>
      tpu.vector_store %arg9[%c0_10, %c0_11], %16 {strides = array<i32>} : memref<8x16xf32, #tpu.memory_space<vmem>>, vector<8x16xf32>,
    } else {
    }
    %3 = arith.cmpi slt, %arg2, %arg1 : i32
    %4 = arith.extui %3 : i1 to i32
    %c0_i32_1 = arith.constant 0 : i32
    %5 = arith.cmpi ne, %4, %c0_i32_1 : i32
    scf.if %5 {
      %c0 = arith.constant 0 : index
      %c0_5 = arith.constant 0 : index
      %c0_6 = arith.constant 0 : index
      %12 = vector.load %arg3[%c0, %c0_5, %c0_6] : memref<1x8x16xf32, #tpu.memory_space<vmem>>, vector<1x8x16xf32>
      %13 = vector.shape_cast %12 : vector<1x8x16xf32> to vector<8x16xf32>
      %c0_7 = arith.constant 0 : index
      %c0_8 = arith.constant 0 : index
      %c0_9 = arith.constant 0 : index
      %14 = vector.load %arg4[%c0_7, %c0_8, %c0_9] : memref<1x8x16xf32, #tpu.memory_space<vmem>>, vector<1x8x16xf32>
      %15 = vector.shape_cast %14 : vector<1x8x16xf32> to vector<8x16xf32>
      %cst = arith.constant dense<0.000000e+00> : vector<8x8xf32>
      %16 = tpu.matmul %13, %15, %cst {dimension_numbers = #tpu.dot_dimension_numbers<[1], [1], [0], [0], [0, 0, 1, 0], [], []>} : vector<8x16xf32>, vector<8x16xf32>, vector<8x8xf32> -> vector<8x8xf32>
      %c0_10 = arith.constant 0 : index
      %c0_11 = arith.constant 0 : index
      %17 = vector.load %arg7[%c0_10, %c0_11] : memref<8x1xf32, #tpu.memory_space<vmem>>, vector<8x1xf32>
      %cst_12 = arith.constant dense<0xFF800000> : vector<8xf32>
      %18 = vector.multi_reduction <maximumf>, %16, %cst_12 [1] : vector<8x8xf32> to vector<8xf32>
      %19 = vector.shape_cast %18 : vector<8xf32> to vector<8x1xf32>
      %20 = arith.maximumf %17, %19 : vector<8x1xf32>
      %21 = arith.subf %17, %20 : vector<8x1xf32>
      %22 = math.exp %21 : vector<8x1xf32>
      %23 = vector.broadcast %20 : vector<8x1xf32> to vector<8x8xf32>
      %24 = arith.subf %16, %23 : vector<8x8xf32>
      %25 = math.exp %24 : vector<8x8xf32>
      %c0_13 = arith.constant 0 : index
      %c0_14 = arith.constant 0 : index
      %26 = vector.load %arg8[%c0_13, %c0_14] : memref<8x1xf32, #tpu.memory_space<vmem>>, vector<8x1xf32>
      %27 = arith.mulf %22, %26 : vector<8x1xf32>
      %cst_15 = arith.constant dense<0.000000e+00> : vector<8xf32>
      %28 = vector.multi_reduction <add>, %25, %cst_15 [1] : vector<8x8xf32> to vector<8xf32>
      %29 = vector.shape_cast %28 : vector<8xf32> to vector<8x1xf32>
      %30 = arith.addf %27, %29 : vector<8x1xf32>
      %c0_16 = arith.constant 0 : index
      %c0_17 = arith.constant 0 : index
      %31 = vector.load %arg8[%c0_16, %c0_17] : memref<8x1xf32, #tpu.memory_space<vmem>>, vector<8x1xf32>
      tpu.vector_store %arg8[%c0_16, %c0_17], %30 {strides = array<i32>} : memref<8x1xf32, #tpu.memory_space<vmem>>, vector<8x1xf32>,
      %c0_18 = arith.constant 0 : index
      %c0_19 = arith.constant 0 : index
      %32 = vector.load %arg9[%c0_18, %c0_19] : memref<8x16xf32, #tpu.memory_space<vmem>>, vector<8x16xf32>
      %33 = vector.broadcast %22 : vector<8x1xf32> to vector<8x16xf32>
      %34 = arith.mulf %33, %32 : vector<8x16xf32>
      %c0_20 = arith.constant 0 : index
      %c0_21 = arith.constant 0 : index
      %c0_22 = arith.constant 0 : index
      %35 = vector.load %arg5[%c0_20, %c0_21, %c0_22] : memref<1x8x16xf32, #tpu.memory_space<vmem>>, vector<1x8x16xf32>
      %36 = vector.shape_cast %35 : vector<1x8x16xf32> to vector<8x16xf32>
      %cst_23 = arith.constant dense<0.000000e+00> : vector<8x16xf32>
      %37 = tpu.matmul %25, %36, %cst_23 {dimension_numbers = #tpu.dot_dimension_numbers<[1], [0], [0], [1], [0, 0, 1, 1], [], []>} : vector<8x8xf32>, vector<8x16xf32>, vector<8x16xf32> -> vector<8x16xf32>
      %38 = arith.addf %34, %37 : vector<8x16xf32>
      %c0_24 = arith.constant 0 : index
      %c0_25 = arith.constant 0 : index
      %39 = vector.load %arg9[%c0_24, %c0_25] : memref<8x16xf32, #tpu.memory_space<vmem>>, vector<8x16xf32>
      tpu.vector_store %arg9[%c0_24, %c0_25], %38 {strides = array<i32>} : memref<8x16xf32, #tpu.memory_space<vmem>>, vector<8x16xf32>,
      %c0_26 = arith.constant 0 : index
      %c0_27 = arith.constant 0 : index
      %40 = vector.load %arg7[%c0_26, %c0_27] : memref<8x1xf32, #tpu.memory_space<vmem>>, vector<8x1xf32>
      tpu.vector_store %arg7[%c0_26, %c0_27], %20 {strides = array<i32>} : memref<8x1xf32, #tpu.memory_space<vmem>>, vector<8x1xf32>,
    } else {
    }
    %6 = arith.cmpi eq, %arg2, %arg1 : i32
    %7 = arith.extui %6 : i1 to i32
    %c0_i32_2 = arith.constant 0 : i32
    %8 = arith.cmpi ne, %7, %c0_i32_2 : i32
    scf.if %8 {
      %c0 = arith.constant 0 : index
      %c0_5 = arith.constant 0 : index
      %c0_6 = arith.constant 0 : index
      %12 = vector.load %arg3[%c0, %c0_5, %c0_6] : memref<1x8x16xf32, #tpu.memory_space<vmem>>, vector<1x8x16xf32>
      %13 = vector.shape_cast %12 : vector<1x8x16xf32> to vector<8x16xf32>
      %c0_7 = arith.constant 0 : index
      %c0_8 = arith.constant 0 : index
      %c0_9 = arith.constant 0 : index
      %14 = vector.load %arg4[%c0_7, %c0_8, %c0_9] : memref<1x8x16xf32, #tpu.memory_space<vmem>>, vector<1x8x16xf32>
      %15 = vector.shape_cast %14 : vector<1x8x16xf32> to vector<8x16xf32>
      %cst = arith.constant dense<0.000000e+00> : vector<8x8xf32>
      %16 = tpu.matmul %13, %15, %cst {dimension_numbers = #tpu.dot_dimension_numbers<[1], [1], [0], [0], [0, 0, 1, 0], [], []>} : vector<8x16xf32>, vector<8x16xf32>, vector<8x8xf32> -> vector<8x8xf32>
      %17 = tpu.iota {dimensions = array<i32: 0>} : vector<8x8xi32>
      %18 = tpu.iota {dimensions = array<i32: 1>} : vector<8x8xi32>
      %19 = arith.cmpi sle, %18, %17 : vector<8x8xi32>
      %cst_10 = arith.constant -1.000000e+30 : f32
      %20 = vector.broadcast %cst_10 : f32 to vector<8x8xf32>
      %21 = arith.select %19, %16, %20 : vector<8x8xi1>, vector<8x8xf32>
      %c0_11 = arith.constant 0 : index
      %c0_12 = arith.constant 0 : index
      %22 = vector.load %arg7[%c0_11, %c0_12] : memref<8x1xf32, #tpu.memory_space<vmem>>, vector<8x1xf32>
      %cst_13 = arith.constant dense<0xFF800000> : vector<8xf32>
      %23 = vector.multi_reduction <maximumf>, %21, %cst_13 [1] : vector<8x8xf32> to vector<8xf32>
      %24 = vector.shape_cast %23 : vector<8xf32> to vector<8x1xf32>
      %25 = arith.maximumf %22, %24 : vector<8x1xf32>
      %26 = arith.subf %22, %25 : vector<8x1xf32>
      %27 = math.exp %26 : vector<8x1xf32>
      %28 = vector.broadcast %25 : vector<8x1xf32> to vector<8x8xf32>
      %29 = arith.subf %21, %28 : vector<8x8xf32>
      %30 = math.exp %29 : vector<8x8xf32>
      %c0_14 = arith.constant 0 : index
      %c0_15 = arith.constant 0 : index
      %31 = vector.load %arg8[%c0_14, %c0_15] : memref<8x1xf32, #tpu.memory_space<vmem>>, vector<8x1xf32>
      %32 = arith.mulf %27, %31 : vector<8x1xf32>
      %cst_16 = arith.constant dense<0.000000e+00> : vector<8xf32>
      %33 = vector.multi_reduction <add>, %30, %cst_16 [1] : vector<8x8xf32> to vector<8xf32>
      %34 = vector.shape_cast %33 : vector<8xf32> to vector<8x1xf32>
      %35 = arith.addf %32, %34 : vector<8x1xf32>
      %c0_17 = arith.constant 0 : index
      %c0_18 = arith.constant 0 : index
      %36 = vector.load %arg8[%c0_17, %c0_18] : memref<8x1xf32, #tpu.memory_space<vmem>>, vector<8x1xf32>
      tpu.vector_store %arg8[%c0_17, %c0_18], %35 {strides = array<i32>} : memref<8x1xf32, #tpu.memory_space<vmem>>, vector<8x1xf32>,
      %c0_19 = arith.constant 0 : index
      %c0_20 = arith.constant 0 : index
      %37 = vector.load %arg9[%c0_19, %c0_20] : memref<8x16xf32, #tpu.memory_space<vmem>>, vector<8x16xf32>
      %38 = vector.broadcast %27 : vector<8x1xf32> to vector<8x16xf32>
      %39 = arith.mulf %38, %37 : vector<8x16xf32>
      %c0_21 = arith.constant 0 : index
      %c0_22 = arith.constant 0 : index
      %c0_23 = arith.constant 0 : index
      %40 = vector.load %arg5[%c0_21, %c0_22, %c0_23] : memref<1x8x16xf32, #tpu.memory_space<vmem>>, vector<1x8x16xf32>
      %41 = vector.shape_cast %40 : vector<1x8x16xf32> to vector<8x16xf32>
      %cst_24 = arith.constant dense<0.000000e+00> : vector<8x16xf32>
      %42 = tpu.matmul %30, %41, %cst_24 {dimension_numbers = #tpu.dot_dimension_numbers<[1], [0], [0], [1], [0, 0, 1, 1], [], []>} : vector<8x8xf32>, vector<8x16xf32>, vector<8x16xf32> -> vector<8x16xf32>
      %43 = arith.addf %39, %42 : vector<8x16xf32>
      %c0_25 = arith.constant 0 : index
      %c0_26 = arith.constant 0 : index
      %44 = vector.load %arg9[%c0_25, %c0_26] : memref<8x16xf32, #tpu.memory_space<vmem>>, vector<8x16xf32>
      tpu.vector_store %arg9[%c0_25, %c0_26], %43 {strides = array<i32>} : memref<8x16xf32, #tpu.memory_space<vmem>>, vector<8x16xf32>,
      %c0_27 = arith.constant 0 : index
      %c0_28 = arith.constant 0 : index
      %45 = vector.load %arg7[%c0_27, %c0_28] : memref<8x1xf32, #tpu.memory_space<vmem>>, vector<8x1xf32>
      tpu.vector_store %arg7[%c0_27, %c0_28], %25 {strides = array<i32>} : memref<8x1xf32, #tpu.memory_space<vmem>>, vector<8x1xf32>,
    } else {
    }
    %c0_i32_3 = arith.constant 0 : i32
    %9 = arith.cmpi eq, %arg2, %c0_i32_3 : i32
    %10 = arith.extui %9 : i1 to i32
    %c0_i32_4 = arith.constant 0 : i32
    %11 = arith.cmpi ne, %10, %c0_i32_4 : i32
    scf.if %11 {
      %c0 = arith.constant 0 : index
      %c0_5 = arith.constant 0 : index
      %12 = vector.load %arg9[%c0, %c0_5] : memref<8x16xf32, #tpu.memory_space<vmem>>, vector<8x16xf32>
      %c0_6 = arith.constant 0 : index
      %c0_7 = arith.constant 0 : index
      %13 = vector.load %arg8[%c0_6, %c0_7] : memref<8x1xf32, #tpu.memory_space<vmem>>, vector<8x1xf32>
      %14 = vector.broadcast %13 : vector<8x1xf32> to vector<8x16xf32>
      %15 = arith.divf %12, %14 : vector<8x16xf32>
      %c0_8 = arith.constant 0 : index
      %c0_9 = arith.constant 0 : index
      %c0_10 = arith.constant 0 : index
      %16 = vector.load %arg6[%c0_8, %c0_9, %c0_10] : memref<1x8x16xf32, #tpu.memory_space<vmem>>, vector<1x8x16xf32>
      %17 = vector.shape_cast %16 : vector<1x8x16xf32> to vector<8x16xf32>
      %18 = vector.shape_cast %15 : vector<8x16xf32> to vector<1x8x16xf32>
      tpu.vector_store %arg6[%c0_8, %c0_9, %c0_10], %18 {strides = array<i32>} : memref<1x8x16xf32, #tpu.memory_space<vmem>>, vector<1x8x16xf32>,
    } else {
    }
    return
  }
  func.func @transform_0(%arg0: i32, %arg1: i32, %arg2: i32) -> (i32, i32, i32) {
    %c0_i32 = arith.constant 0 : i32
    %c0_i32_0 = arith.constant 0 : i32
    return %arg0, %arg1, %c0_i32 : i32, i32, i32
  }
  func.func @transform_1(%arg0: i32, %arg1: i32, %arg2: i32) -> (i32, i32, i32) {
    %0 = arith.minsi %arg2, %arg1 : i32
    %c0_i32 = arith.constant 0 : i32
    %c0_i32_0 = arith.constant 0 : i32
    return %arg0, %0, %c0_i32 : i32, i32, i32
  }
  func.func @transform_2(%arg0: i32, %arg1: i32, %arg2: i32) -> (i32, i32, i32) {
    %0 = arith.minsi %arg2, %arg1 : i32
    %c0_i32 = arith.constant 0 : i32
    %c0_i32_0 = arith.constant 0 : i32
    return %arg0, %0, %c0_i32 : i32, i32, i32
  }
  func.func @transform_3(%arg0: i32, %arg1: i32, %arg2: i32) -> (i32, i32, i32) {
    %c0_i32 = arith.constant 0 : i32
    %c0_i32_0 = arith.constant 0 : i32
    return %arg0, %arg1, %c0_i32 : i32, i32, i32
  }
}

module attributes {stable_mosaic.version = 11 : i64} {
  func.func @qkv_proj_kernel(%arg0: i32, %arg1: i32, %arg2: memref<1x8x32xf32, #tpu.memory_space<vmem>>, %arg3: memref<32x48xf32, #tpu.memory_space<vmem>>, %arg4: memref<1x8x16xf32, #tpu.memory_space<vmem>>, %arg5: memref<1x8x16xf32, #tpu.memory_space<vmem>>, %arg6: memref<1x8x16xf32, #tpu.memory_space<vmem>>) attributes {dimension_semantics = [#tpu.dimension_semantics<parallel>, #tpu.dimension_semantics<parallel>], iteration_bounds = array<i64: 2, 1>, scalar_prefetch = 0 : i64, scratch_operands = 0 : i64, tpu.core_type = #tpu.core_type<tc>, window_params = [{transform_indices = @transform_0, window_bounds = array<i64: 1, 8, 32>}, {pipeline_mode = #tpu.pipeline_mode<synchronous>, transform_indices = @transform_1, window_bounds = array<i64: 32, 48>}, {transform_indices = @transform_2, window_bounds = array<i64: 1, 8, 16>}, {transform_indices = @transform_3, window_bounds = array<i64: 1, 8, 16>}, {transform_indices = @transform_4, window_bounds = array<i64: 1, 8, 16>}]} {
    %c0 = arith.constant 0 : index
    %c0_0 = arith.constant 0 : index
    %c0_1 = arith.constant 0 : index
    %0 = vector.load %arg2[%c0, %c0_0, %c0_1] : memref<1x8x32xf32, #tpu.memory_space<vmem>>, vector<1x8x32xf32>
    %1 = vector.shape_cast %0 : vector<1x8x32xf32> to vector<8x32xf32>
    %c0_2 = arith.constant 0 : index
    %c0_3 = arith.constant 0 : index
    %2 = vector.load %arg3[%c0_2, %c0_3] : memref<32x48xf32, #tpu.memory_space<vmem>>, vector<32x48xf32>
    %cst = arith.constant dense<0.000000e+00> : vector<8x48xf32>
    %3 = tpu.matmul %1, %2, %cst {dimension_numbers = #tpu.dot_dimension_numbers<[1], [0], [0], [1], [0, 0, 1, 1], [], []>} : vector<8x32xf32>, vector<32x48xf32>, vector<8x48xf32> -> vector<8x48xf32>
    %4 = vector.extract_strided_slice %3 {offsets = [0, 0], sizes = [8, 16], strides = [1, 1]} : vector<8x48xf32> to vector<8x16xf32>
    %c0_4 = arith.constant 0 : index
    %c0_5 = arith.constant 0 : index
    %c0_6 = arith.constant 0 : index
    %5 = vector.load %arg4[%c0_4, %c0_5, %c0_6] : memref<1x8x16xf32, #tpu.memory_space<vmem>>, vector<1x8x16xf32>
    %6 = vector.shape_cast %5 : vector<1x8x16xf32> to vector<8x16xf32>
    %7 = vector.shape_cast %4 : vector<8x16xf32> to vector<1x8x16xf32>
    tpu.vector_store %arg4[%c0_4, %c0_5, %c0_6], %7 {strides = array<i32>} : memref<1x8x16xf32, #tpu.memory_space<vmem>>, vector<1x8x16xf32>,
    %8 = vector.extract_strided_slice %3 {offsets = [0, 16], sizes = [8, 16], strides = [1, 1]} : vector<8x48xf32> to vector<8x16xf32>
    %c0_7 = arith.constant 0 : index
    %c0_8 = arith.constant 0 : index
    %c0_9 = arith.constant 0 : index
    %9 = vector.load %arg5[%c0_7, %c0_8, %c0_9] : memref<1x8x16xf32, #tpu.memory_space<vmem>>, vector<1x8x16xf32>
    %10 = vector.shape_cast %9 : vector<1x8x16xf32> to vector<8x16xf32>
    %11 = vector.shape_cast %8 : vector<8x16xf32> to vector<1x8x16xf32>
    tpu.vector_store %arg5[%c0_7, %c0_8, %c0_9], %11 {strides = array<i32>} : memref<1x8x16xf32, #tpu.memory_space<vmem>>, vector<1x8x16xf32>,
    %12 = vector.extract_strided_slice %3 {offsets = [0, 32], sizes = [8, 16], strides = [1, 1]} : vector<8x48xf32> to vector<8x16xf32>
    %c0_10 = arith.constant 0 : index
    %c0_11 = arith.constant 0 : index
    %c0_12 = arith.constant 0 : index
    %13 = vector.load %arg6[%c0_10, %c0_11, %c0_12] : memref<1x8x16xf32, #tpu.memory_space<vmem>>, vector<1x8x16xf32>
    %14 = vector.shape_cast %13 : vector<1x8x16xf32> to vector<8x16xf32>
    %15 = vector.shape_cast %12 : vector<8x16xf32> to vector<1x8x16xf32>
    tpu.vector_store %arg6[%c0_10, %c0_11, %c0_12], %15 {strides = array<i32>} : memref<1x8x16xf32, #tpu.memory_space<vmem>>, vector<1x8x16xf32>,
    return
  }
  func.func @transform_0(%arg0: i32, %arg1: i32) -> (i32, i32, i32) {
    %c0_i32 = arith.constant 0 : i32
    %c0_i32_0 = arith.constant 0 : i32
    return %arg0, %arg1, %c0_i32 : i32, i32, i32
  }
  func.func @transform_1(%arg0: i32, %arg1: i32) -> (i32, i32) {
    %c0_i32 = arith.constant 0 : i32
    %c0_i32_0 = arith.constant 0 : i32
    %c0_i32_1 = arith.constant 0 : i32
    return %c0_i32, %c0_i32_0 : i32, i32
  }
  func.func @transform_2(%arg0: i32, %arg1: i32) -> (i32, i32, i32) {
    %c0_i32 = arith.constant 0 : i32
    %c0_i32_0 = arith.constant 0 : i32
    return %arg0, %arg1, %c0_i32 : i32, i32, i32
  }
  func.func @transform_3(%arg0: i32, %arg1: i32) -> (i32, i32, i32) {
    %c0_i32 = arith.constant 0 : i32
    %c0_i32_0 = arith.constant 0 : i32
    return %arg0, %arg1, %c0_i32 : i32, i32, i32
  }
  func.func @transform_4(%arg0: i32, %arg1: i32) -> (i32, i32, i32) {
    %c0_i32 = arith.constant 0 : i32
    %c0_i32_0 = arith.constant 0 : i32
    return %arg0, %arg1, %c0_i32 : i32, i32, i32
  }
}

</mosaic_0001>

<llo_original>
// kernel: head_forward.2
$region0: #{head_forward.2}
  #allocation0 [shape = 'u32[]', space=smem, size = 0x4, offset = 0x4, fixed_abs, tag = 'smem constant byte address 0x4 - core index']
  #allocation1 [shape = 'u32[144,128]{1,0:T(1,128)}', space=vmem, size = 0x12000, scoped, tag = 'internal scratch']
  %s0 = inlined_call_operand.hbm [shape: f32[2,8,32], index: 0, kind: input, shape index: {}]
  %s1 = inlined_call_operand.hbm [shape: f32[32,48], index: 1, kind: input, shape index: {}]
  %s2 = inlined_call_operand.vmem [shape: f32[2,8,16], index: 2, kind: output, shape index: {0}]
  %s3 = inlined_call_operand.vmem [shape: f32[2,8,16], index: 3, kind: output, shape index: {1}]
  %s4 = inlined_call_operand.vmem [shape: f32[2,8,16], index: 4, kind: output, shape index: {2}]
  %5 = xla_tuple %s2, %s3, %s4
  %s6 = sld [smem:[#allocation0]]
  $region65: #{head_forward.2} parent=0
    _
  %s8 = ssub.s32 1, %s6
  %s9 = scalar_select 0, %s8, %s6
  $region1: #{head_forward.2} parent=0
    #allocation2 [shape = 'u8[8192]{0}', space=vmem, size = 0x2000, scoped, tag = 'input window, operand 0']
    #allocation3 [shape = 's32[2]{0}', space=sflag, size = 0x8, scoped, tag = 'scoped memory for head_forward.2']
    #allocation4 [shape = 'u8[16384]{0}', space=vmem, size = 0x4000, scoped, tag = 'input window, operand 1, single buffered']
    #allocation5 [shape = 's32[1]{0}', space=sflag, size = 0x4, scoped, tag = 'scoped memory for head_forward.2']
    %10 = vsyncpa [#allocation3], 0
    %s11 = scalar_lea.sflag [#allocation3], 1
    %12 = vsyncpa %s11, 0
    %13 = vsyncpa [#allocation5], 0
    loop: start=0, step=1, limit=4
    $region2: #{head_forward.2} parent=1 // loop_pre_header
      _
    $region3: #{head_forward.2} parent=1 // loop_header
      %s15 = sphi 0, %s19
      %p16 = scmp.ge.s32.totalorder %s15, 4
      %s22 = sphi 0, %s34
      %s23 = sphi 0, %s30
      %s24 = sphi 0, %s22
      %s25 = sphi 0, %s23
      %s26 = sphi 0, %s24
      %s27 = sphi 0, %s25
      %s39 = sphi 0, %s41
      %s42 = sphi 0, %s39
      %s43 = sphi 0, %s42
      %s59 = sphi 0, %s43
      %s63 = sphi 0, %s63
      %s65 = sphi 0, %s63
      %s66 = sphi 0, %s65
      %s80 = sphi 0, %s66
      %s88 = sphi 0, %s90
      %s91 = sphi 0, %s88
      %s92 = sphi 0, %s91
      %s108 = sphi 0, %s92
      %s116 = sphi 0, %s118
      %s119 = sphi 0, %s116
      %s120 = sphi 0, %s119
      %s136 = sphi 0, %s120
      %s144 = sphi 0, %s146
      %s147 = sphi 0, %s144
      %s148 = sphi 0, %s147
      %s164 = sphi 0, %s148
    $region4: #{head_forward.2} parent=1 // loop_header_branch
      %18 = sbr.rel (%p16) target = $region8
    $region5: #{head_forward.2} parent=1 // loop_body
      %s20 = ssub.s32 %s15, 1
      %s21 = ssub.s32 %s15, 2
      %s28 = sadd.s32 1, %s23
      %p29 = scmp.ge.s32.totalorder %s28, 1
      %s30 = scalar_select %p29, 0, %s28
      %s31 = sadd.s32 1, %s22
      %s32 = scalar_select %p29, %s31, %s22
      %p33 = scmp.ge.s32.totalorder %s32, 2
      %s34 = scalar_select %p33, 0, %s32
      %s35 = ssub.s32 %s22, %s34
      %s36 = ssub.s32 %s23, %s30
      %s37 = sor.u32 %s35, %s36
      %p38 = scmp.eq.s32.totalorder %s37, 0
      %s40 = sadd.s32 %s39, 1
      %s41 = scalar_select %p38, %s39, %s40
      %p44 = pneg %p38
      %p45 = scmp.eq.s32.totalorder %s15, 1
      %p46 = por %p44, %p45
      %p47 = scmp.ne.s32.totalorder %s39, %s42
      %p48 = scmp.eq.s32.totalorder %s15, 0
      %p49 = por %p47, %p48
      %p50 = scmp.ne.s32.totalorder %s39, %s42
      %p51 = scmp.eq.s32.totalorder %s20, 1
      %p52 = por %p50, %p51
      %p53 = scmp.ne.s32.totalorder %s42, %s43
      %p54 = scmp.eq.s32.totalorder %s20, 0
      %p55 = por %p53, %p54
      %p56 = scmp.ne.s32.totalorder %s42, %s43
      %p57 = scmp.eq.s32.totalorder %s21, 1
      %p58 = por %p56, %p57
      %p60 = scmp.ne.s32.totalorder %s43, %s59
      %p61 = scmp.eq.s32.totalorder %s21, 0
      %p62 = por %p60, %p61
      %s64 = sadd.s32 %s63, 1
      %p67 = scmp.eq.s32.totalorder %s15, 1
      %p68 = scmp.ne.s32.totalorder %s63, %s65
      %p69 = scmp.eq.s32.totalorder %s15, 0
      %p70 = por %p68, %p69
      %p71 = scmp.ne.s32.totalorder %s63, %s65
      %p72 = scmp.eq.s32.totalorder %s20, 1
      %p73 = por %p71, %p72
      %p74 = scmp.ne.s32.totalorder %s65, %s66
      %p75 = scmp.eq.s32.totalorder %s20, 0
      %p76 = por %p74, %p75
      %p77 = scmp.ne.s32.totalorder %s65, %s66
      %p78 = scmp.eq.s32.totalorder %s21, 1
      %p79 = por %p77, %p78
      %p81 = scmp.ne.s32.totalorder %s66, %s80
      %p82 = scmp.eq.s32.totalorder %s21, 0
      %p83 = por %p81, %p82
      %s84 = ssub.s32 %s22, %s34
      %s85 = ssub.s32 %s23, %s30
      %s86 = sor.u32 %s84, %s85
      %p87 = scmp.eq.s32.totalorder %s86, 0
      %s89 = sadd.s32 %s88, 1
      %s90 = scalar_select %p87, %s88, %s89
      %p93 = pneg %p87
      %p94 = scmp.eq.s32.totalorder %s15, 1
      %p95 = por %p93, %p94
      %p96 = scmp.ne.s32.totalorder %s88, %s91
      %p97 = scmp.eq.s32.totalorder %s15, 0
      %p98 = por %p96, %p97
      %p99 = scmp.ne.s32.totalorder %s88, %s91
      %p100 = scmp.eq.s32.totalorder %s20, 1
      %p101 = por %p99, %p100
      %p102 = scmp.ne.s32.totalorder %s91, %s92
      %p103 = scmp.eq.s32.totalorder %s20, 0
      %p104 = por %p102, %p103
      %p105 = scmp.ne.s32.totalorder %s91, %s92
      %p106 = scmp.eq.s32.totalorder %s21, 1
      %p107 = por %p105, %p106
      %p109 = scmp.ne.s32.totalorder %s92, %s108
      %p110 = scmp.eq.s32.totalorder %s21, 0
      %p111 = por %p109, %p110
      %s112 = ssub.s32 %s22, %s34
      %s113 = ssub.s32 %s23, %s30
      %s114 = sor.u32 %s112, %s113
      %p115 = scmp.eq.s32.totalorder %s114, 0
      %s117 = sadd.s32 %s116, 1
      %s118 = scalar_select %p115, %s116, %s117
      %p121 = pneg %p115
      %p122 = scmp.eq.s32.totalorder %s15, 1
      %p123 = por %p121, %p122
      %p124 = scmp.ne.s32.totalorder %s116, %s119
      %p125 = scmp.eq.s32.totalorder %s15, 0
      %p126 = por %p124, %p125
      %p127 = scmp.ne.s32.totalorder %s116, %s119
      %p128 = scmp.eq.s32.totalorder %s20, 1
      %p129 = por %p127, %p128
      %p130 = scmp.ne.s32.totalorder %s119, %s120
      %p131 = scmp.eq.s32.totalorder %s20, 0
      %p132 = por %p130, %p131
      %p133 = scmp.ne.s32.totalorder %s119, %s120
      %p134 = scmp.eq.s32.totalorder %s21, 1
      %p135 = por %p133, %p134
      %p137 = scmp.ne.s32.totalorder %s120, %s136
      %p138 = scmp.eq.s32.totalorder %s21, 0
      %p139 = por %p137, %p138
      %s140 = ssub.s32 %s22, %s34
      %s141 = ssub.s32 %s23, %s30
      %s142 = sor.u32 %s140, %s141
      %p143 = scmp.eq.s32.totalorder %s142, 0
      %s145 = sadd.s32 %s144, 1
      %s146 = scalar_select %p143, %s144, %s145
      %p149 = pneg %p143
      %p150 = scmp.eq.s32.totalorder %s15, 1
      %p151 = por %p149, %p150
      %p152 = scmp.ne.s32.totalorder %s144, %s147
      %p153 = scmp.eq.s32.totalorder %s15, 0
      %p154 = por %p152, %p153
      %p155 = scmp.ne.s32.totalorder %s144, %s147
      %p156 = scmp.eq.s32.totalorder %s20, 1
      %p157 = por %p155, %p156
      %p158 = scmp.ne.s32.totalorder %s147, %s148
      %p159 = scmp.eq.s32.totalorder %s20, 0
      %p160 = por %p158, %p159
      %p161 = scmp.ne.s32.totalorder %s147, %s148
      %p162 = scmp.eq.s32.totalorder %s21, 1
      %p163 = por %p161, %p162
      %p165 = scmp.ne.s32.totalorder %s148, %s164
      %p166 = scmp.eq.s32.totalorder %s21, 0
      %p167 = por %p165, %p166
      %p168 = scmp.le.s32.totalorder 1, %s15
      %p169 = scmp.lt.s32.totalorder %s15, 3
      %p170 = pnand %p168, %p169
      %p171 = pneg %p170
      // Predicated region
      $region9: #{head_forward.2} parent=5 // pred_check
        _
      $region10: #{head_forward.2} parent=5 // pred_check_branch
        %173 = sbr.rel (%p170) target = $region12
      $region11: #{head_forward.2} parent=5 // pred_region
        %s174 = ssub.s32 %s15, 1
        // Predicated region
        $region13: #{head_forward.2} parent=11 // pred_check
          %p175 = pneg %p76
        $region14: #{head_forward.2} parent=11 // pred_check_branch
          %177 = sbr.rel (%p175) target = $region16
        $region15: #{head_forward.2} parent=11 // pred_region
          %s179 = ssub.s32 512, 512
          %180 = vsyncadd [#allocation5], %s179
          %s181 = sshll.u32 [#allocation4], 4
          %s182 = int_to_ptr.vmem [resolvable:$true] %s181
          %187 = dma.hbm_to_vmem [thread:$0]  %s1, 512, %s182, [#allocation5], 128, 128, 8
        $region16: #{head_forward.2} parent=11 // pred_fallthru
          _
      $region12: #{head_forward.2} parent=5 // pred_fallthru
        _
      %p188 = scmp.lt.s32.totalorder %s15, 2
      // Predicated region
      $region17: #{head_forward.2} parent=5 // pred_check
        %p189 = pneg %p188
      $region18: #{head_forward.2} parent=5 // pred_check_branch
        %191 = sbr.rel (%p189) target = $region20
      $region19: #{head_forward.2} parent=5 // pred_region
        // Predicated region
        $region21: #{head_forward.2} parent=19 // pred_check
          %p192 = pneg %p49
        $region22: #{head_forward.2} parent=19 // pred_check_branch
          %194 = sbr.rel (%p192) target = $region24
        $region23: #{head_forward.2} parent=19 // pred_region
          %s195 = sand.u32 %s39, 1
          %s196 = scalar_lea.sflag [#allocation3], %s195
          %s197 = sand.u32 %s39, 1
          %s198 = smul.addr %s197, 8
          %s199 = scalar_lea.vmem [#allocation2], %s198
          %s201 = ssub.s32 128, 128
          %202 = vsyncadd %s196, %s201
          %s203 = sadd.s32 %s23, %s22
          %s204 = smul.addr %s203, 128
          %s205 = scalar_lea.hbm %s0, %s204
          %s207 = sshll.u32 %s199, 4
          %s208 = int_to_ptr.vmem [resolvable:$true] %s207
          %210 = dma.hbm_to_vmem [thread:$0]  %s205, 128, %s208, %s196
        $region24: #{head_forward.2} parent=19 // pred_fallthru
          _
      $region20: #{head_forward.2} parent=5 // pred_fallthru
        _
      %p211 = scmp.le.s32.totalorder 1, %s15
      %p212 = scmp.lt.s32.totalorder %s15, 3
      %p213 = pnand %p211, %p212
      %p214 = pneg %p213
      // Predicated region
      $region25: #{head_forward.2} parent=5 // pred_check
        _
      $region26: #{head_forward.2} parent=5 // pred_check_branch
        %216 = sbr.rel (%p213) target = $region28
      $region27: #{head_forward.2} parent=5 // pred_region
        %s217 = ssub.s32 %s15, 1
        %s218 = sand.u32 %s42, 1
        %s219 = scalar_lea.sflag [#allocation3], %s218
        %s220 = sand.u32 %s42, 1
        %s221 = smul.addr %s220, 8
        %s222 = scalar_lea.vmem [#allocation2], %s221
        // Predicated region
        $region29: #{head_forward.2} parent=27 // pred_check
          %p223 = pneg %p55
        $region30: #{head_forward.2} parent=27 // pred_check_branch
          %225 = sbr.rel (%p223) target = $region32
        $region31: #{head_forward.2} parent=27 // pred_region
          %226 = dma.done %s219, 128
        $region32: #{head_forward.2} parent=27 // pred_fallthru
          _
        // Predicated region
        $region33: #{head_forward.2} parent=27 // pred_check
          %p227 = pneg %p76
        $region34: #{head_forward.2} parent=27 // pred_check_branch
          %229 = sbr.rel (%p227) target = $region36
        $region35: #{head_forward.2} parent=27 // pred_region
          %230 = dma.done [#allocation5], 512
        $region36: #{head_forward.2} parent=27 // pred_fallthru
          _
        %s231 = sand.u32 %s42, 1
        %s232 = scalar_lea.sflag [#allocation3], %s231
        %s233 = sand.u32 %s42, 1
        %s234 = smul.addr %s233, 8
        %s235 = scalar_lea.vmem [#allocation2], %s234
        %p236 = pneg %p55
        %p237 = pneg %p52
        %p238 = pneg %p76
        %p239 = pneg %p73
        %p240 = pneg %p104
        %p241 = pneg %p101
        %p242 = scmp.lt.s32.totalorder %s24, 1
        %s243 = scalar_select %p242, %s24, 1
        %p244 = scmp.lt.s32.totalorder %s25, 0
        %s245 = scalar_select %p244, %s25, 0
        %s246 = sadd.s32 %s245, %s243
        %s247 = smul.addr %s246, 8
        %s248 = scalar_lea.vmem %s2, %s247
        %p249 = pneg %p132
        %p250 = pneg %p129
        %p251 = scmp.lt.s32.totalorder %s24, 1
        %s252 = scalar_select %p251, %s24, 1
        %p253 = scmp.lt.s32.totalorder %s25, 0
        %s254 = scalar_select %p253, %s25, 0
        %s255 = sadd.s32 %s254, %s252
        %s256 = smul.addr %s255, 8
        %s257 = scalar_lea.vmem %s3, %s256
        %p258 = pneg %p160
        %p259 = pneg %p157
        %p260 = scmp.lt.s32.totalorder %s24, 1
        %s261 = scalar_select %p260, %s24, 1
        %p262 = scmp.lt.s32.totalorder %s25, 0
        %s263 = scalar_select %p262, %s25, 0
        %s264 = sadd.s32 %s263, %s261
        %s265 = smul.addr %s264, 8
        %s266 = scalar_lea.vmem %s4, %s265
        %p267 = scmp.lt.s32.totalorder %s24, 1
        %s268 = scalar_select %p267, %s24, 1
        %p269 = scmp.lt.s32.totalorder %s25, 0
        %s270 = scalar_select %p269, %s25, 0
        %s271 = sadd.s32 %s270, %s268
        %s272 = smul.addr %s271, 8
        %s273 = scalar_lea.vmem %s2, %s272
        %p274 = scmp.lt.s32.totalorder %s24, 1
        %s275 = scalar_select %p274, %s24, 1
        %p276 = scmp.lt.s32.totalorder %s25, 0
        %s277 = scalar_select %p276, %s25, 0
        %s278 = sadd.s32 %s277, %s275
        %s279 = smul.addr %s278, 8
        %s280 = scalar_lea.vmem %s3, %s279
        %p281 = scmp.lt.s32.totalorder %s24, 1
        %s282 = scalar_select %p281, %s24, 1
        %p283 = scmp.lt.s32.totalorder %s25, 0
        %s284 = scalar_select %p283, %s25, 0
        %s285 = sadd.s32 %s284, %s282
        %s286 = smul.addr %s285, 8
        %s287 = scalar_lea.vmem %s4, %s286
        %v288 = vld [vmem:[%s222] sm:$0xff]
        %v289 = vld [vmem:[#allocation4] sm:$0xff]
        %v290 = vld [vmem:[#allocation4 + $0x8] sm:$0xff]
        %v291 = vld [vmem:[#allocation4 + $0x10] sm:$0xff]
        %v292 = vld [vmem:[#allocation4 + $0x18] sm:$0xff]
        %vm293 = vcmask 261120
        %v295 = vsel %vm293, %v288, 0
        %297 = vmatprep.subr.mxu0 0.0
        %298 = vmatpush1.msra.mxu0 %v289
        %299 = vmatprep.subr.mxu0 0.0
        %300 = vmatpush1.msra.mxu0 %v290
        %301 = vmatprep.subr.mxu0 0.0
        %302 = vmatpush1.msra.mxu0 %v291
        %303 = vmatprep.subr.mxu0 0.0
        %304 = vmatpush1.msra.mxu0 %v292
        %305 = vmatprep.subr.mxu0 0.0
        %306 = vmatpush1.msra.mxu0 0.0
        %307 = vmatprep.subr.mxu0 0.0
        %308 = vmatpush1.msra.mxu0 0.0
        %309 = vmatprep.subr.mxu0 0.0
        %310 = vmatpush1.msra.mxu0 0.0
        %311 = vmatprep.subr.mxu0 0.0
        %312 = vmatpush1.msra.mxu0 0.0
        %313 = vmatprep.subr.mxu0 0.0
        %314 = vmatpush1.msra.mxu0 0.0
        %315 = vmatprep.subr.mxu0 0.0
        %316 = vmatpush1.msra.mxu0 0.0
        %317 = vmatprep.subr.mxu0 0.0
        %318 = vmatpush1.msra.mxu0 0.0
        %319 = vmatprep.subr.mxu0 0.0
        %320 = vmatpush1.msra.mxu0 0.0
        %321 = vmatprep.subr.mxu0 0.0
        %322 = vmatpush1.msra.mxu0 0.0
        %323 = vmatprep.subr.mxu0 0.0
        %324 = vmatpush1.msra.mxu0 0.0
        %325 = vmatprep.subr.mxu0 0.0
        %326 = vmatpush1.msra.mxu0 0.0
        %327 = vmatprep.subr.mxu0 0.0
        %328 = vmatpush1.msra.mxu0 0.0
        %329 = vmatprep.subr.mxu0 0.0
        %330 = vmatpush1.msra.mxu0 0.0
        %331 = vmatprep.subr.mxu0 0.0
        %332 = vmatpush1.msra.mxu0 0.0
        %333 = vmatprep.subr.mxu0 0.0
        %334 = vmatpush1.msra.mxu0 0.0
        %335 = vmatprep.subr.mxu0 0.0
        %336 = vmatpush1.msra.mxu0 0.0
        %337 = vmatprep.subr.mxu0 0.0
        %338 = vmatpush1.msra.mxu0 0.0
        %339 = vmatprep.subr.mxu0 0.0
        %340 = vmatpush1.msra.mxu0 0.0
        %341 = vmatprep.subr.mxu0 0.0
        %342 = vmatpush1.msra.mxu0 0.0
        %343 = vmatprep.subr.mxu0 0.0
        %344 = vmatpush1.msra.mxu0 0.0
        %345 = vmatprep.subr.mxu0 0.0
        %346 = vmatpush1.msra.mxu0 0.0
        %347 = vmatprep.subr.mxu0 0.0
        %348 = vmatpush1.msra.mxu0 0.0
        %349 = vmatprep.subr.mxu0 0.0
        %350 = vmatpush1.msra.mxu0 0.0
        %351 = vmatprep.subr.mxu0 0.0
        %352 = vmatpush1.msra.mxu0 0.0
        %353 = vmatprep.subr.mxu0 0.0
        %354 = vmatpush1.msra.mxu0 0.0
        %355 = vmatprep.subr.mxu0 0.0
        %356 = vmatpush1.msra.mxu0 0.0
        %357 = vmatprep.subr.mxu0 0.0
        %358 = vmatpush1.msra.mxu0 0.0
        %359 = vmatprep.subr.mxu0 0.0
        %360 = vmatpush1.msra.mxu0 0.0
        %361 = vmatprep.mubr.f32.mxu0 0.0
        %362 = vmatmul.mubr.f32.gmra.mrb[0].mxu0 %v295
        %v363 = vpop.f32.mrb[0].mxu0
        %v364 = vadd.f32 0.0, %v363
        %v365 = vpop.f32.mrb[0].mxu0
        %366 = vdwg.mxu0
        %vm367 = vcmask 130048
        %368 = vst.msk [vmem:[%s273] sm:$0xff] %vm367, %v364
        %370 = vrot.lane.b32.xlu0 %v364, 112
        %v371 = vpop.permute.xlu0 %370
        %373 = vst.msk [vmem:[%s280] sm:$0xff] %vm367, %v371
        %374 = vrot.lane.b32.xlu0 %v364, 96
        %v375 = vpop.permute.xlu0 %374
        %377 = vst.msk [vmem:[%s287] sm:$0xff] %vm367, %v375
        %p378 = scmp.lt.s32.totalorder %s24, 1
        %s379 = scalar_select %p378, %s24, 1
        %p380 = scmp.lt.s32.totalorder %s25, 0
        %s381 = scalar_select %p380, %s25, 0
        %s382 = sadd.s32 %s381, %s379
        %s383 = smul.addr %s382, 8
        %s384 = scalar_lea.vmem %s2, %s383
        %p385 = scmp.lt.s32.totalorder %s24, 1
        %s386 = scalar_select %p385, %s24, 1
        %p387 = scmp.lt.s32.totalorder %s25, 0
        %s388 = scalar_select %p387, %s25, 0
        %s389 = sadd.s32 %s388, %s386
        %s390 = smul.addr %s389, 8
        %s391 = scalar_lea.vmem %s3, %s390
        %p392 = scmp.lt.s32.totalorder %s24, 1
        %s393 = scalar_select %p392, %s24, 1
        %p394 = scmp.lt.s32.totalorder %s25, 0
        %s395 = scalar_select %p394, %s25, 0
        %s396 = sadd.s32 %s395, %s393
        %s397 = smul.addr %s396, 8
        %s398 = scalar_lea.vmem %s4, %s397
        // Predicated region
        $region37: #{head_forward.2} parent=27 // pred_check
          %p399 = pneg %p101
        $region38: #{head_forward.2} parent=27 // pred_check_branch
          %401 = sbr.rel (%p399) target = $region40
        $region39: #{head_forward.2} parent=27 // pred_region
          _
        $region40: #{head_forward.2} parent=27 // pred_fallthru
          _
        // Predicated region
        $region41: #{head_forward.2} parent=27 // pred_check
          %p402 = pneg %p129
        $region42: #{head_forward.2} parent=27 // pred_check_branch
          %404 = sbr.rel (%p402) target = $region44
        $region43: #{head_forward.2} parent=27 // pred_region
          _
        $region44: #{head_forward.2} parent=27 // pred_fallthru
          _
        // Predicated region
        $region45: #{head_forward.2} parent=27 // pred_check
          %p405 = pneg %p157
        $region46: #{head_forward.2} parent=27 // pred_check_branch
          %407 = sbr.rel (%p405) target = $region48
        $region47: #{head_forward.2} parent=27 // pred_region
          _
        $region48: #{head_forward.2} parent=27 // pred_fallthru
          _
      $region28: #{head_forward.2} parent=5 // pred_fallthru
        _
      %p408 = scmp.le.s32.totalorder 2, %s15
      // Predicated region
      $region49: #{head_forward.2} parent=5 // pred_check
        %p409 = pneg %p408
      $region50: #{head_forward.2} parent=5 // pred_check_branch
        %411 = sbr.rel (%p409) target = $region52
      $region51: #{head_forward.2} parent=5 // pred_region
        %s412 = ssub.s32 %s15, 2
        // Predicated region
        $region53: #{head_forward.2} parent=51 // pred_check
          %p413 = pneg %p107
        $region54: #{head_forward.2} parent=51 // pred_check_branch
          %415 = sbr.rel (%p413) target = $region56
        $region55: #{head_forward.2} parent=51 // pred_region
          %p416 = scmp.lt.s32.totalorder %s26, 1
          %s417 = scalar_select %p416, %s26, 1
          %p418 = scmp.lt.s32.totalorder %s27, 0
          %s419 = scalar_select %p418, %s27, 0
          %s420 = sadd.s32 %s419, %s417
          %s421 = smul.addr %s420, 8
          %s422 = scalar_lea.vmem %s2, %s421
        $region56: #{head_forward.2} parent=51 // pred_fallthru
          _
        // Predicated region
        $region57: #{head_forward.2} parent=51 // pred_check
          %p423 = pneg %p135
        $region58: #{head_forward.2} parent=51 // pred_check_branch
          %425 = sbr.rel (%p423) target = $region60
        $region59: #{head_forward.2} parent=51 // pred_region
          %p426 = scmp.lt.s32.totalorder %s26, 1
          %s427 = scalar_select %p426, %s26, 1
          %p428 = scmp.lt.s32.totalorder %s27, 0
          %s429 = scalar_select %p428, %s27, 0
          %s430 = sadd.s32 %s429, %s427
          %s431 = smul.addr %s430, 8
          %s432 = scalar_lea.vmem %s3, %s431
        $region60: #{head_forward.2} parent=51 // pred_fallthru
          _
        // Predicated region
        $region61: #{head_forward.2} parent=51 // pred_check
          %p433 = pneg %p163
        $region62: #{head_forward.2} parent=51 // pred_check_branch
          %435 = sbr.rel (%p433) target = $region64
        $region63: #{head_forward.2} parent=51 // pred_region
          %p436 = scmp.lt.s32.totalorder %s26, 1
          %s437 = scalar_select %p436, %s26, 1
          %p438 = scmp.lt.s32.totalorder %s27, 0
          %s439 = scalar_select %p438, %s27, 0
          %s440 = sadd.s32 %s439, %s437
          %s441 = smul.addr %s440, 8
          %s442 = scalar_lea.vmem %s4, %s441
        $region64: #{head_forward.2} parent=51 // pred_fallthru
          _
      $region52: #{head_forward.2} parent=5 // pred_fallthru
        _
    $region6: #{head_forward.2} parent=1 // loop_footer
      %s19 = sadd.s32 1, %s15
    $region7: #{head_forward.2} parent=1 // loop_footer_branch
      %14 = sbr.rel target = $region3
    $region8: #{head_forward.2} parent=1 // loop_exit
      _
    %443 = vsyncpa [#allocation3], 1
    %s444 = scalar_lea.sflag [#allocation3], 1
    %445 = vsyncpa %s444, 1
    %446 = vsyncpa [#allocation5], 1

// kernel: head_forward.3
$region0: #{head_forward.3}
  #allocation0 [shape = 'u32[]', space=smem, size = 0x4, offset = 0x4, fixed_abs, tag = 'smem constant byte address 0x4 - core index']
  #allocation1 [shape = 'u32[144,128]{1,0:T(1,128)}', space=vmem, size = 0x12000, scoped, tag = 'internal scratch']
  #allocation2 [shape = 'f32[8,1]{1,0:T(8,128)}', space=vmem, size = 0x1000, scoped, tag = 'scratch operand']
  #allocation3 [shape = 'f32[8,1]{1,0:T(8,128)}', space=vmem, size = 0x1000, scoped, tag = 'scratch operand']
  #allocation4 [shape = 'f32[8,16]{1,0:T(8,128)}', space=vmem, size = 0x1000, scoped, tag = 'scratch operand']
  %s0 = inlined_call_operand.vmem [shape: f32[2,8,16], index: 0, kind: input, shape index: {}]
  %s1 = inlined_call_operand.vmem [shape: f32[2,8,16], index: 1, kind: input, shape index: {}]
  %s2 = inlined_call_operand.vmem [shape: f32[2,8,16], index: 2, kind: input, shape index: {}]
  %s3 = inlined_call_operand.hbm [shape: f32[2,8,16], index: 3, kind: output, shape index: {}]
  %s4 = sld [smem:[#allocation0]]
  $region61: #{head_forward.3} parent=0
    _
  %s6 = ssub.s32 1, %s4
  %s7 = scalar_select 0, %s6, %s4
  $region1: #{head_forward.3} parent=0
    #allocation5 [shape = 'u8[8192]{0}', space=vmem, size = 0x2000, scoped, tag = 'output window, operand 0']
    #allocation6 [shape = 's32[2]{0}', space=sflag, size = 0x8, scoped, tag = 'scoped memory for head_forward.3']
    %8 = vsyncpa [#allocation6], 0
    %s9 = scalar_lea.sflag [#allocation6], 1
    %10 = vsyncpa %s9, 0
    loop: start=0, step=1, limit=4
    $region2: #{head_forward.3} parent=1 // loop_pre_header
      _
    $region3: #{head_forward.3} parent=1 // loop_header
      %s12 = sphi 0, %s16
      %p13 = scmp.ge.s32.totalorder %s12, 4
      %s19 = sphi 0, %s38
      %s20 = sphi 0, %s34
      %s21 = sphi 0, %s30
      %s22 = sphi 0, %s19
      %s23 = sphi 0, %s20
      %s24 = sphi 0, %s21
      %s25 = sphi 0, %s22
      %s26 = sphi 0, %s23
      %s27 = sphi 0, %s24
      %s43 = sphi 0, %s45
      %s46 = sphi 0, %s43
      %s47 = sphi 0, %s46
      %s63 = sphi 0, %s47
      %s75 = sphi 0, %s77
      %s78 = sphi 0, %s75
      %s79 = sphi 0, %s78
      %s95 = sphi 0, %s79
      %s107 = sphi 0, %s109
      %s110 = sphi 0, %s107
      %s111 = sphi 0, %s110
      %s127 = sphi 0, %s111
      %s135 = sphi 0, %s137
      %s138 = sphi 0, %s135
      %s139 = sphi 0, %s138
      %s155 = sphi 0, %s139
    $region4: #{head_forward.3} parent=1 // loop_header_branch
      %15 = sbr.rel (%p13) target = $region8
    $region5: #{head_forward.3} parent=1 // loop_body
      %s17 = ssub.s32 %s12, 1
      %s18 = ssub.s32 %s12, 2
      %s28 = sadd.s32 1, %s21
      %p29 = scmp.ge.s32.totalorder %s28, 1
      %s30 = scalar_select %p29, 0, %s28
      %s31 = sadd.s32 1, %s20
      %s32 = scalar_select %p29, %s31, %s20
      %p33 = scmp.ge.s32.totalorder %s32, 1
      %s34 = scalar_select %p33, 0, %s32
      %s35 = sadd.s32 1, %s19
      %s36 = scalar_select %p33, %s35, %s19
      %p37 = scmp.ge.s32.totalorder %s36, 2
      %s38 = scalar_select %p37, 0, %s36
      %s39 = ssub.s32 %s19, %s38
      %s40 = ssub.s32 %s20, %s34
      %s41 = sor.u32 %s39, %s40
      %p42 = scmp.eq.s32.totalorder %s41, 0
      %s44 = sadd.s32 %s43, 1
      %s45 = scalar_select %p42, %s43, %s44
      %p48 = pneg %p42
      %p49 = scmp.eq.s32.totalorder %s12, 1
      %p50 = por %p48, %p49
      %p51 = scmp.ne.s32.totalorder %s43, %s46
      %p52 = scmp.eq.s32.totalorder %s12, 0
      %p53 = por %p51, %p52
      %p54 = scmp.ne.s32.totalorder %s43, %s46
      %p55 = scmp.eq.s32.totalorder %s17, 1
      %p56 = por %p54, %p55
      %p57 = scmp.ne.s32.totalorder %s46, %s47
      %p58 = scmp.eq.s32.totalorder %s17, 0
      %p59 = por %p57, %p58
      %p60 = scmp.ne.s32.totalorder %s46, %s47
      %p61 = scmp.eq.s32.totalorder %s18, 1
      %p62 = por %p60, %p61
      %p64 = scmp.ne.s32.totalorder %s47, %s63
      %p65 = scmp.eq.s32.totalorder %s18, 0
      %p66 = por %p64, %p65
      %p67 = scmp.lt.s32.totalorder %s21, %s20
      %s68 = scalar_select %p67, %s21, %s20
      %p69 = scmp.lt.s32.totalorder %s30, %s34
      %s70 = scalar_select %p69, %s30, %s34
      %s71 = ssub.s32 %s19, %s38
      %s72 = ssub.s32 %s68, %s70
      %s73 = sor.u32 %s71, %s72
      %p74 = scmp.eq.s32.totalorder %s73, 0
      %s76 = sadd.s32 %s75, 1
      %s77 = scalar_select %p74, %s75, %s76
      %p80 = pneg %p74
      %p81 = scmp.eq.s32.totalorder %s12, 1
      %p82 = por %p80, %p81
      %p83 = scmp.ne.s32.totalorder %s75, %s78
      %p84 = scmp.eq.s32.totalorder %s12, 0
      %p85 = por %p83, %p84
      %p86 = scmp.ne.s32.totalorder %s75, %s78
      %p87 = scmp.eq.s32.totalorder %s17, 1
      %p88 = por %p86, %p87
      %p89 = scmp.ne.s32.totalorder %s78, %s79
      %p90 = scmp.eq.s32.totalorder %s17, 0
      %p91 = por %p89, %p90
      %p92 = scmp.ne.s32.totalorder %s78, %s79
      %p93 = scmp.eq.s32.totalorder %s18, 1
      %p94 = por %p92, %p93
      %p96 = scmp.ne.s32.totalorder %s79, %s95
      %p97 = scmp.eq.s32.totalorder %s18, 0
      %p98 = por %p96, %p97
      %p99 = scmp.lt.s32.totalorder %s21, %s20
      %s100 = scalar_select %p99, %s21, %s20
      %p101 = scmp.lt.s32.totalorder %s30, %s34
      %s102 = scalar_select %p101, %s30, %s34
      %s103 = ssub.s32 %s19, %s38
      %s104 = ssub.s32 %s100, %s102
      %s105 = sor.u32 %s103, %s104
      %p106 = scmp.eq.s32.totalorder %s105, 0
      %s108 = sadd.s32 %s107, 1
      %s109 = scalar_select %p106, %s107, %s108
      %p112 = pneg %p106
      %p113 = scmp.eq.s32.totalorder %s12, 1
      %p114 = por %p112, %p113
      %p115 = scmp.ne.s32.totalorder %s107, %s110
      %p116 = scmp.eq.s32.totalorder %s12, 0
      %p117 = por %p115, %p116
      %p118 = scmp.ne.s32.totalorder %s107, %s110
      %p119 = scmp.eq.s32.totalorder %s17, 1
      %p120 = por %p118, %p119
      %p121 = scmp.ne.s32.totalorder %s110, %s111
      %p122 = scmp.eq.s32.totalorder %s17, 0
      %p123 = por %p121, %p122
      %p124 = scmp.ne.s32.totalorder %s110, %s111
      %p125 = scmp.eq.s32.totalorder %s18, 1
      %p126 = por %p124, %p125
      %p128 = scmp.ne.s32.totalorder %s111, %s127
      %p129 = scmp.eq.s32.totalorder %s18, 0
      %p130 = por %p128, %p129
      %s131 = ssub.s32 %s19, %s38
      %s132 = ssub.s32 %s20, %s34
      %s133 = sor.u32 %s131, %s132
      %p134 = scmp.eq.s32.totalorder %s133, 0
      %s136 = sadd.s32 %s135, 1
      %s137 = scalar_select %p134, %s135, %s136
      %p140 = pneg %p134
      %p141 = scmp.eq.s32.totalorder %s12, 1
      %p142 = por %p140, %p141
      %p143 = scmp.ne.s32.totalorder %s135, %s138
      %p144 = scmp.eq.s32.totalorder %s12, 0
      %p145 = por %p143, %p144
      %p146 = scmp.ne.s32.totalorder %s135, %s138
      %p147 = scmp.eq.s32.totalorder %s17, 1
      %p148 = por %p146, %p147
      %p149 = scmp.ne.s32.totalorder %s138, %s139
      %p150 = scmp.eq.s32.totalorder %s17, 0
      %p151 = por %p149, %p150
      %p152 = scmp.ne.s32.totalorder %s138, %s139
      %p153 = scmp.eq.s32.totalorder %s18, 1
      %p154 = por %p152, %p153
      %p156 = scmp.ne.s32.totalorder %s139, %s155
      %p157 = scmp.eq.s32.totalorder %s18, 0
      %p158 = por %p156, %p157
      %p159 = scmp.le.s32.totalorder 1, %s12
      %p160 = scmp.lt.s32.totalorder %s12, 3
      %p161 = pnand %p159, %p160
      %p162 = pneg %p161
      // Predicated region
      $region9: #{head_forward.3} parent=5 // pred_check
        _
      $region10: #{head_forward.3} parent=5 // pred_check_branch
        %164 = sbr.rel (%p161) target = $region12
      $region11: #{head_forward.3} parent=5 // pred_region
        %s165 = ssub.s32 %s12, 1
      $region12: #{head_forward.3} parent=5 // pred_fallthru
        _
      %p166 = scmp.lt.s32.totalorder %s12, 2
      // Predicated region
      $region13: #{head_forward.3} parent=5 // pred_check
        %p167 = pneg %p166
      $region14: #{head_forward.3} parent=5 // pred_check_branch
        %169 = sbr.rel (%p167) target = $region16
      $region15: #{head_forward.3} parent=5 // pred_region
        // Predicated region
        $region17: #{head_forward.3} parent=15 // pred_check
          %p170 = pneg %p53
        $region18: #{head_forward.3} parent=15 // pred_check_branch
          %172 = sbr.rel (%p170) target = $region20
        $region19: #{head_forward.3} parent=15 // pred_region
          %p173 = scmp.lt.s32.totalorder %s19, 1
          %s174 = scalar_select %p173, %s19, 1
          %p175 = scmp.lt.s32.totalorder %s20, 0
          %s176 = scalar_select %p175, %s20, 0
          %s177 = sadd.s32 %s176, %s174
          %s178 = smul.addr %s177, 8
          %s179 = scalar_lea.vmem %s0, %s178
        $region20: #{head_forward.3} parent=15 // pred_fallthru
          _
        // Predicated region
        $region21: #{head_forward.3} parent=15 // pred_check
          %p180 = pneg %p85
        $region22: #{head_forward.3} parent=15 // pred_check_branch
          %182 = sbr.rel (%p180) target = $region24
        $region23: #{head_forward.3} parent=15 // pred_region
          %p183 = scmp.lt.s32.totalorder %s21, %s20
          %s184 = scalar_select %p183, %s21, %s20
          %p185 = scmp.lt.s32.totalorder %s19, 1
          %s186 = scalar_select %p185, %s19, 1
          %p187 = scmp.lt.s32.totalorder %s184, 0
          %s188 = scalar_select %p187, %s184, 0
          %s189 = sadd.s32 %s188, %s186
          %s190 = smul.addr %s189, 8
          %s191 = scalar_lea.vmem %s1, %s190
          %p192 = scmp.lt.s32.totalorder %s21, %s20
          %s193 = scalar_select %p192, %s21, %s20
        $region24: #{head_forward.3} parent=15 // pred_fallthru
          _
        // Predicated region
        $region25: #{head_forward.3} parent=15 // pred_check
          %p194 = pneg %p117
        $region26: #{head_forward.3} parent=15 // pred_check_branch
          %196 = sbr.rel (%p194) target = $region28
        $region27: #{head_forward.3} parent=15 // pred_region
          %p197 = scmp.lt.s32.totalorder %s21, %s20
          %s198 = scalar_select %p197, %s21, %s20
          %p199 = scmp.lt.s32.totalorder %s19, 1
          %s200 = scalar_select %p199, %s19, 1
          %p201 = scmp.lt.s32.totalorder %s198, 0
          %s202 = scalar_select %p201, %s198, 0
          %s203 = sadd.s32 %s202, %s200
          %s204 = smul.addr %s203, 8
          %s205 = scalar_lea.vmem %s2, %s204
          %p206 = scmp.lt.s32.totalorder %s21, %s20
          %s207 = scalar_select %p206, %s21, %s20
        $region28: #{head_forward.3} parent=15 // pred_fallthru
          _
      $region16: #{head_forward.3} parent=5 // pred_fallthru
        _
      %p208 = scmp.le.s32.totalorder 1, %s12
      %p209 = scmp.lt.s32.totalorder %s12, 3
      %p210 = pnand %p208, %p209
      %p211 = pneg %p210
      // Predicated region
      $region29: #{head_forward.3} parent=5 // pred_check
        _
      $region30: #{head_forward.3} parent=5 // pred_check_branch
        %213 = sbr.rel (%p210) target = $region32
      $region31: #{head_forward.3} parent=5 // pred_region
        %s214 = ssub.s32 %s12, 1
        %p215 = scmp.lt.s32.totalorder %s22, 1
        %s216 = scalar_select %p215, %s22, 1
        %p217 = scmp.lt.s32.totalorder %s23, 0
        %s218 = scalar_select %p217, %s23, 0
        %s219 = sadd.s32 %s218, %s216
        %s220 = smul.addr %s219, 8
        %s221 = scalar_lea.vmem %s0, %s220
        %p222 = pneg %p59
        %p223 = pneg %p56
        %p224 = scmp.lt.s32.totalorder %s24, %s23
        %s225 = scalar_select %p224, %s24, %s23
        %p226 = scmp.lt.s32.totalorder %s22, 1
        %s227 = scalar_select %p226, %s22, 1
        %p228 = scmp.lt.s32.totalorder %s225, 0
        %s229 = scalar_select %p228, %s225, 0
        %s230 = sadd.s32 %s229, %s227
        %s231 = smul.addr %s230, 8
        %s232 = scalar_lea.vmem %s1, %s231
        %p233 = pneg %p91
        %p234 = pneg %p88
        %p235 = scmp.lt.s32.totalorder %s24, %s23
        %s236 = scalar_select %p235, %s24, %s23
        %p237 = scmp.lt.s32.totalorder %s22, 1
        %s238 = scalar_select %p237, %s22, 1
        %p239 = scmp.lt.s32.totalorder %s236, 0
        %s240 = scalar_select %p239, %s236, 0
        %s241 = sadd.s32 %s240, %s238
        %s242 = smul.addr %s241, 8
        %s243 = scalar_lea.vmem %s2, %s242
        %p244 = pneg %p123
        %p245 = pneg %p120
        %p246 = pneg %p151
        %p247 = pneg %p148
        %s248 = sand.u32 %s138, 1
        %s249 = scalar_lea.sflag [#allocation6], %s248
        %s250 = sand.u32 %s138, 1
        %s251 = smul.addr %s250, 8
        %s252 = scalar_lea.vmem [#allocation5], %s251
        %p253 = scmp.lt.s32.totalorder %s22, 1
        %s254 = scalar_select %p253, %s22, 1
        %p255 = scmp.lt.s32.totalorder %s23, 0
        %s256 = scalar_select %p255, %s23, 0
        %s257 = sadd.s32 %s256, %s254
        %s258 = smul.addr %s257, 8
        %s259 = scalar_lea.vmem %s0, %s258
        %p260 = scmp.lt.s32.totalorder %s24, %s23
        %s261 = scalar_select %p260, %s24, %s23
        %p262 = scmp.lt.s32.totalorder %s22, 1
        %s263 = scalar_select %p262, %s22, 1
        %p264 = scmp.lt.s32.totalorder %s261, 0
        %s265 = scalar_select %p264, %s261, 0
        %s266 = sadd.s32 %s265, %s263
        %s267 = smul.addr %s266, 8
        %s268 = scalar_lea.vmem %s1, %s267
        %p269 = scmp.lt.s32.totalorder %s24, %s23
        %s270 = scalar_select %p269, %s24, %s23
        %p271 = scmp.lt.s32.totalorder %s24, %s23
        %s272 = scalar_select %p271, %s24, %s23
        %p273 = scmp.lt.s32.totalorder %s22, 1
        %s274 = scalar_select %p273, %s22, 1
        %p275 = scmp.lt.s32.totalorder %s272, 0
        %s276 = scalar_select %p275, %s272, 0
        %s277 = sadd.s32 %s276, %s274
        %s278 = smul.addr %s277, 8
        %s279 = scalar_lea.vmem %s2, %s278
        %p280 = scmp.lt.s32.totalorder %s24, %s23
        %s281 = scalar_select %p280, %s24, %s23
        %p282 = scmp.eq.s32.totalorder %s24, 0
        // Predicated region
        $region33: #{head_forward.3} parent=31 // pred_check
          %p283 = pneg %p282
        $region34: #{head_forward.3} parent=31 // pred_check_branch
          %285 = sbr.rel (%p283) target = $region36
        $region35: #{head_forward.3} parent=31 // pred_region
          %vm286 = vcmask 7168
          %287 = vst.msk [vmem:[#allocation2] sm:$0xff] %vm286, -1e+30
          %288 = vst.msk [vmem:[#allocation3] sm:$0xff] %vm286, 0.0
          %vm289 = vcmask 130048
          %290 = vst.msk [vmem:[#allocation4] sm:$0xff] %vm289, 0.0
        $region36: #{head_forward.3} parent=31 // pred_fallthru
          _
        %p291 = scmp.lt.s32.totalorder %s24, %s23
        // Predicated region
        $region37: #{head_forward.3} parent=31 // pred_check
          %p292 = pneg %p291
        $region38: #{head_forward.3} parent=31 // pred_check_branch
          %294 = sbr.rel (%p292) target = $region40
        $region39: #{head_forward.3} parent=31 // pred_region
          %v295 = vld [vmem:[%s259] sm:$0xff]
          %v296 = vld [vmem:[%s268] sm:$0xff]
          %vm297 = vcmask 130048
          %v299 = vsel %vm297, %v295, 0
          %v302 = vsel %vm297, %v296, 0
          %304 = vmatprep.subr.mxu0 0.0
          %305 = vmatpush1.xpose.msra.mxu0 %v302
          %306 = vmatprep.subr.mxu0 0.0
          %307 = vmatpush1.xpose.msra.mxu0 0.0
          %308 = vmatprep.subr.mxu0 0.0
          %309 = vmatpush1.xpose.msra.mxu0 0.0
          %310 = vmatprep.subr.mxu0 0.0
          %311 = vmatpush1.xpose.msra.mxu0 0.0
          %312 = vmatprep.subr.mxu0 0.0
          %313 = vmatpush1.xpose.msra.mxu0 0.0
          %314 = vmatprep.subr.mxu0 0.0
          %315 = vmatpush1.xpose.msra.mxu0 0.0
          %316 = vmatprep.subr.mxu0 0.0
          %317 = vmatpush1.xpose.msra.mxu0 0.0
          %318 = vmatprep.subr.mxu0 0.0
          %319 = vmatpush1.xpose.msra.mxu0 0.0
          %320 = vmatprep.subr.mxu0 0.0
          %321 = vmatpush1.xpose.msra.mxu0 0.0
          %322 = vmatprep.subr.mxu0 0.0
          %323 = vmatpush1.xpose.msra.mxu0 0.0
          %324 = vmatprep.subr.mxu0 0.0
          %325 = vmatpush1.xpose.msra.mxu0 0.0
          %326 = vmatprep.subr.mxu0 0.0
          %327 = vmatpush1.xpose.msra.mxu0 0.0
          %328 = vmatprep.subr.mxu0 0.0
          %329 = vmatpush1.xpose.msra.mxu0 0.0
          %330 = vmatprep.subr.mxu0 0.0
          %331 = vmatpush1.xpose.msra.mxu0 0.0
          %332 = vmatprep.subr.mxu0 0.0
          %333 = vmatpush1.xpose.msra.mxu0 0.0
          %334 = vmatprep.subr.mxu0 0.0
          %335 = vmatpush1.xpose.msra.mxu0 0.0
          %336 = vmatprep.subr.mxu0 0.0
          %337 = vmatpush1.xpose.msra.mxu0 0.0
          %338 = vmatprep.subr.mxu0 0.0
          %339 = vmatpush1.xpose.msra.mxu0 0.0
          %340 = vmatprep.subr.mxu0 0.0
          %341 = vmatpush1.xpose.msra.mxu0 0.0
          %342 = vmatprep.subr.mxu0 0.0
          %343 = vmatpush1.xpose.msra.mxu0 0.0
          %344 = vmatprep.subr.mxu0 0.0
          %345 = vmatpush1.xpose.msra.mxu0 0.0
          %346 = vmatprep.subr.mxu0 0.0
          %347 = vmatpush1.xpose.msra.mxu0 0.0
          %348 = vmatprep.subr.mxu0 0.0
          %349 = vmatpush1.xpose.msra.mxu0 0.0
          %350 = vmatprep.subr.mxu0 0.0
          %351 = vmatpush1.xpose.msra.mxu0 0.0
          %352 = vmatprep.subr.mxu0 0.0
          %353 = vmatpush1.xpose.msra.mxu0 0.0
          %354 = vmatprep.subr.mxu0 0.0
          %355 = vmatpush1.xpose.msra.mxu0 0.0
          %356 = vmatprep.subr.mxu0 0.0
          %357 = vmatpush1.xpose.msra.mxu0 0.0
          %358 = vmatprep.subr.mxu0 0.0
          %359 = vmatpush1.xpose.msra.mxu0 0.0
          %360 = vmatprep.subr.mxu0 0.0
          %361 = vmatpush1.xpose.msra.mxu0 0.0
          %362 = vmatprep.subr.mxu0 0.0
          %363 = vmatpush1.xpose.msra.mxu0 0.0
          %364 = vmatprep.subr.mxu0 0.0
          %365 = vmatpush1.xpose.msra.mxu0 0.0
          %366 = vmatprep.subr.mxu0 0.0
          %367 = vmatpush1.xpose.msra.mxu0 0.0
          %368 = vmatprep.mubr.f32.mxu0 0.0
          %369 = vmatmul.mubr.f32.gmra.mrb[0].mxu0 %v299
          %v370 = vpop.f32.mrb[0].mxu0
          %v371 = vadd.f32 0.0, %v370
          %v372 = vpop.f32.mrb[0].mxu0
          %373 = vdwg.mxu0
          %v374 = vld [vmem:[#allocation2] sm:$0xff]
          %vm375 = vcmask 64512
          %v376 = vsel %vm375, %v371, -inf
          %377 = vmax.xlane.f32.xlu0 %v376
          %v378 = vpop.xlane.xlu0 %377
          %v379 = vmax.f32 %v374, %v378
          %v380 = vsub.f32 %v374, %v379
          %v381 = vmul.f32 %v380, 1.442695
          %v382 = vpow.pop %v381
          %384 = vset.pattern.permute.xlu0 0
          %385 = vperm.xlu0 %384, %v379
          %v386 = vpop.permute.xlu0 %385
          %v388 = vsub.f32 %v371, %v386
          %v389 = vmul.f32 %v388, 1.442695
          %v390 = vpow.pop %v389
          %v391 = vld [vmem:[#allocation3] sm:$0xff]
          %v392 = vmul.f32 %v382, %v391
          %v393 = vsel %vm375, %v390, 0.0
          %394 = vadd.xlane.f32.xlu0 %v393
          %v395 = vpop.xlane.xlu0 %394
          %v396 = vadd.f32 %v392, %v395
          %vm397 = vcmask 7168
          %398 = vst.msk [vmem:[#allocation3] sm:$0xff] %vm397, %v396
          %v399 = vld [vmem:[#allocation4] sm:$0xff]
          %401 = vset.pattern.permute.xlu0 0
          %402 = vperm.xlu0 %401, %v382
          %v403 = vpop.permute.xlu0 %402
          %v405 = vmul.f32 %v403, %v399
          %v406 = vld [vmem:[%s279] sm:$0xff]
          %v408 = vsel %vm375, %v390, 0
          %410 = vmatprep.subr.mxu0 0.0
          %411 = vmatpush1.msra.mxu0 %v406
          %412 = vmatprep.subr.mxu0 0.0
          %413 = vmatpush1.msra.mxu0 0.0
          %414 = vmatprep.subr.mxu0 0.0
          %415 = vmatpush1.msra.mxu0 0.0
          %416 = vmatprep.subr.mxu0 0.0
          %417 = vmatpush1.msra.mxu0 0.0
          %418 = vmatprep.subr.mxu0 0.0
          %419 = vmatpush1.msra.mxu0 0.0
          %420 = vmatprep.subr.mxu0 0.0
          %421 = vmatpush1.msra.mxu0 0.0
          %422 = vmatprep.subr.mxu0 0.0
          %423 = vmatpush1.msra.mxu0 0.0
          %424 = vmatprep.subr.mxu0 0.0
          %425 = vmatpush1.msra.mxu0 0.0
          %426 = vmatprep.subr.mxu0 0.0
          %427 = vmatpush1.msra.mxu0 0.0
          %428 = vmatprep.subr.mxu0 0.0
          %429 = vmatpush1.msra.mxu0 0.0
          %430 = vmatprep.subr.mxu0 0.0
          %431 = vmatpush1.msra.mxu0 0.0
          %432 = vmatprep.subr.mxu0 0.0
          %433 = vmatpush1.msra.mxu0 0.0
          %434 = vmatprep.subr.mxu0 0.0
          %435 = vmatpush1.msra.mxu0 0.0
          %436 = vmatprep.subr.mxu0 0.0
          %437 = vmatpush1.msra.mxu0 0.0
          %438 = vmatprep.subr.mxu0 0.0
          %439 = vmatpush1.msra.mxu0 0.0
          %440 = vmatprep.subr.mxu0 0.0
          %441 = vmatpush1.msra.mxu0 0.0
          %442 = vmatprep.subr.mxu0 0.0
          %443 = vmatpush1.msra.mxu0 0.0
          %444 = vmatprep.subr.mxu0 0.0
          %445 = vmatpush1.msra.mxu0 0.0
          %446 = vmatprep.subr.mxu0 0.0
          %447 = vmatpush1.msra.mxu0 0.0
          %448 = vmatprep.subr.mxu0 0.0
          %449 = vmatpush1.msra.mxu0 0.0
          %450 = vmatprep.subr.mxu0 0.0
          %451 = vmatpush1.msra.mxu0 0.0
          %452 = vmatprep.subr.mxu0 0.0
          %453 = vmatpush1.msra.mxu0 0.0
          %454 = vmatprep.subr.mxu0 0.0
          %455 = vmatpush1.msra.mxu0 0.0
          %456 = vmatprep.subr.mxu0 0.0
          %457 = vmatpush1.msra.mxu0 0.0
          %458 = vmatprep.subr.mxu0 0.0
          %459 = vmatpush1.msra.mxu0 0.0
          %460 = vmatprep.subr.mxu0 0.0
          %461 = vmatpush1.msra.mxu0 0.0
          %462 = vmatprep.subr.mxu0 0.0
          %463 = vmatpush1.msra.mxu0 0.0
          %464 = vmatprep.subr.mxu0 0.0
          %465 = vmatpush1.msra.mxu0 0.0
          %466 = vmatprep.subr.mxu0 0.0
          %467 = vmatpush1.msra.mxu0 0.0
          %468 = vmatprep.subr.mxu0 0.0
          %469 = vmatpush1.msra.mxu0 0.0
          %470 = vmatprep.subr.mxu0 0.0
          %471 = vmatpush1.msra.mxu0 0.0
          %472 = vmatprep.subr.mxu0 0.0
          %473 = vmatpush1.msra.mxu0 0.0
          %474 = vmatprep.mubr.f32.mxu0 0.0
          %475 = vmatmul.mubr.f32.gmra.mrb[0].mxu0 %v408
          %v476 = vpop.f32.mrb[0].mxu0
          %v477 = vadd.f32 0.0, %v476
          %v478 = vpop.f32.mrb[0].mxu0
          %479 = vdwg.mxu0
          %v480 = vadd.f32 %v405, %v477
          %481 = vst.msk [vmem:[#allocation4] sm:$0xff] %vm297, %v480
          %482 = vst.msk [vmem:[#allocation2] sm:$0xff] %vm397, %v379
        $region40: #{head_forward.3} parent=31 // pred_fallthru
          _
        %p483 = scmp.eq.s32.totalorder %s24, %s23
        // Predicated region
        $region41: #{head_forward.3} parent=31 // pred_check
          %p484 = pneg %p483
        $region42: #{head_forward.3} parent=31 // pred_check_branch
          %486 = sbr.rel (%p484) target = $region44
        $region43: #{head_forward.3} parent=31 // pred_region
          %v487 = vld [vmem:[%s259] sm:$0xff]
          %v488 = vld [vmem:[%s268] sm:$0xff]
          %vm489 = vcmask 130048
          %v491 = vsel %vm489, %v487, 0
          %v494 = vsel %vm489, %v488, 0
          %496 = vmatprep.subr.mxu0 0.0
          %497 = vmatpush1.xpose.msra.mxu0 %v494
          %498 = vmatprep.subr.mxu0 0.0
          %499 = vmatpush1.xpose.msra.mxu0 0.0
          %500 = vmatprep.subr.mxu0 0.0
          %501 = vmatpush1.xpose.msra.mxu0 0.0
          %502 = vmatprep.subr.mxu0 0.0
          %503 = vmatpush1.xpose.msra.mxu0 0.0
          %504 = vmatprep.subr.mxu0 0.0
          %505 = vmatpush1.xpose.msra.mxu0 0.0
          %506 = vmatprep.subr.mxu0 0.0
          %507 = vmatpush1.xpose.msra.mxu0 0.0
          %508 = vmatprep.subr.mxu0 0.0
          %509 = vmatpush1.xpose.msra.mxu0 0.0
          %510 = vmatprep.subr.mxu0 0.0
          %511 = vmatpush1.xpose.msra.mxu0 0.0
          %512 = vmatprep.subr.mxu0 0.0
          %513 = vmatpush1.xpose.msra.mxu0 0.0
          %514 = vmatprep.subr.mxu0 0.0
          %515 = vmatpush1.xpose.msra.mxu0 0.0
          %516 = vmatprep.subr.mxu0 0.0
          %517 = vmatpush1.xpose.msra.mxu0 0.0
          %518 = vmatprep.subr.mxu0 0.0
          %519 = vmatpush1.xpose.msra.mxu0 0.0
          %520 = vmatprep.subr.mxu0 0.0
          %521 = vmatpush1.xpose.msra.mxu0 0.0
          %522 = vmatprep.subr.mxu0 0.0
          %523 = vmatpush1.xpose.msra.mxu0 0.0
          %524 = vmatprep.subr.mxu0 0.0
          %525 = vmatpush1.xpose.msra.mxu0 0.0
          %526 = vmatprep.subr.mxu0 0.0
          %527 = vmatpush1.xpose.msra.mxu0 0.0
          %528 = vmatprep.subr.mxu0 0.0
          %529 = vmatpush1.xpose.msra.mxu0 0.0
          %530 = vmatprep.subr.mxu0 0.0
          %531 = vmatpush1.xpose.msra.mxu0 0.0
          %532 = vmatprep.subr.mxu0 0.0
          %533 = vmatpush1.xpose.msra.mxu0 0.0
          %534 = vmatprep.subr.mxu0 0.0
          %535 = vmatpush1.xpose.msra.mxu0 0.0
          %536 = vmatprep.subr.mxu0 0.0
          %537 = vmatpush1.xpose.msra.mxu0 0.0
          %538 = vmatprep.subr.mxu0 0.0
          %539 = vmatpush1.xpose.msra.mxu0 0.0
          %540 = vmatprep.subr.mxu0 0.0
          %541 = vmatpush1.xpose.msra.mxu0 0.0
          %542 = vmatprep.subr.mxu0 0.0
          %543 = vmatpush1.xpose.msra.mxu0 0.0
          %544 = vmatprep.subr.mxu0 0.0
          %545 = vmatpush1.xpose.msra.mxu0 0.0
          %546 = vmatprep.subr.mxu0 0.0
          %547 = vmatpush1.xpose.msra.mxu0 0.0
          %548 = vmatprep.subr.mxu0 0.0
          %549 = vmatpush1.xpose.msra.mxu0 0.0
          %550 = vmatprep.subr.mxu0 0.0
          %551 = vmatpush1.xpose.msra.mxu0 0.0
          %552 = vmatprep.subr.mxu0 0.0
          %553 = vmatpush1.xpose.msra.mxu0 0.0
          %554 = vmatprep.subr.mxu0 0.0
          %555 = vmatpush1.xpose.msra.mxu0 0.0
          %556 = vmatprep.subr.mxu0 0.0
          %557 = vmatpush1.xpose.msra.mxu0 0.0
          %558 = vmatprep.subr.mxu0 0.0
          %559 = vmatpush1.xpose.msra.mxu0 0.0
          %560 = vmatprep.mubr.f32.mxu0 0.0
          %561 = vmatmul.mubr.f32.gmra.mrb[0].mxu0 %v491
          %v562 = vpop.f32.mrb[0].mxu0
          %v563 = vadd.f32 0.0, %v562
          %v564 = vpop.f32.mrb[0].mxu0
          %565 = vdwg.mxu0
          %v566 = vlaneseq
          %v567 = vshrl.u32 %v566, 7
          %v568 = vlaneseq
          %v569 = vand.u32 %v568, 127
          %vm570 = vcmp.le.s32.totalorder %v569, %v567
          %v571 = vsel %vm570, %v563, -1e+30
          %v572 = vld [vmem:[#allocation2] sm:$0xff]
          %vm573 = vcmask 64512
          %v574 = vsel %vm573, %v571, -inf
          %575 = vmax.xlane.f32.xlu0 %v574
          %v576 = vpop.xlane.xlu0 %575
          %v577 = vmax.f32 %v572, %v576
          %v578 = vsub.f32 %v572, %v577
          %v579 = vmul.f32 %v578, 1.442695
          %v580 = vpow.pop %v579
          %582 = vset.pattern.permute.xlu0 0
          %583 = vperm.xlu0 %582, %v577
          %v584 = vpop.permute.xlu0 %583
          %v586 = vsub.f32 %v571, %v584
          %v587 = vmul.f32 %v586, 1.442695
          %v588 = vpow.pop %v587
          %v589 = vld [vmem:[#allocation3] sm:$0xff]
          %v590 = vmul.f32 %v580, %v589
          %v591 = vsel %vm573, %v588, 0.0
          %592 = vadd.xlane.f32.xlu0 %v591
          %v593 = vpop.xlane.xlu0 %592
          %v594 = vadd.f32 %v590, %v593
          %vm595 = vcmask 7168
          %596 = vst.msk [vmem:[#allocation3] sm:$0xff] %vm595, %v594
          %v597 = vld [vmem:[#allocation4] sm:$0xff]
          %599 = vset.pattern.permute.xlu0 0
          %600 = vperm.xlu0 %599, %v580
          %v601 = vpop.permute.xlu0 %600
          %v603 = vmul.f32 %v601, %v597
          %v604 = vld [vmem:[%s279] sm:$0xff]
          %v606 = vsel %vm573, %v588, 0
          %608 = vmatprep.subr.mxu0 0.0
          %609 = vmatpush1.msra.mxu0 %v604
          %610 = vmatprep.subr.mxu0 0.0
          %611 = vmatpush1.msra.mxu0 0.0
          %612 = vmatprep.subr.mxu0 0.0
          %613 = vmatpush1.msra.mxu0 0.0
          %614 = vmatprep.subr.mxu0 0.0
          %615 = vmatpush1.msra.mxu0 0.0
          %616 = vmatprep.subr.mxu0 0.0
          %617 = vmatpush1.msra.mxu0 0.0
          %618 = vmatprep.subr.mxu0 0.0
          %619 = vmatpush1.msra.mxu0 0.0
          %620 = vmatprep.subr.mxu0 0.0
          %621 = vmatpush1.msra.mxu0 0.0
          %622 = vmatprep.subr.mxu0 0.0
          %623 = vmatpush1.msra.mxu0 0.0
          %624 = vmatprep.subr.mxu0 0.0
          %625 = vmatpush1.msra.mxu0 0.0
          %626 = vmatprep.subr.mxu0 0.0
          %627 = vmatpush1.msra.mxu0 0.0
          %628 = vmatprep.subr.mxu0 0.0
          %629 = vmatpush1.msra.mxu0 0.0
          %630 = vmatprep.subr.mxu0 0.0
          %631 = vmatpush1.msra.mxu0 0.0
          %632 = vmatprep.subr.mxu0 0.0
          %633 = vmatpush1.msra.mxu0 0.0
          %634 = vmatprep.subr.mxu0 0.0
          %635 = vmatpush1.msra.mxu0 0.0
          %636 = vmatprep.subr.mxu0 0.0
          %637 = vmatpush1.msra.mxu0 0.0
          %638 = vmatprep.subr.mxu0 0.0
          %639 = vmatpush1.msra.mxu0 0.0
          %640 = vmatprep.subr.mxu0 0.0
          %641 = vmatpush1.msra.mxu0 0.0
          %642 = vmatprep.subr.mxu0 0.0
          %643 = vmatpush1.msra.mxu0 0.0
          %644 = vmatprep.subr.mxu0 0.0
          %645 = vmatpush1.msra.mxu0 0.0
          %646 = vmatprep.subr.mxu0 0.0
          %647 = vmatpush1.msra.mxu0 0.0
          %648 = vmatprep.subr.mxu0 0.0
          %649 = vmatpush1.msra.mxu0 0.0
          %650 = vmatprep.subr.mxu0 0.0
          %651 = vmatpush1.msra.mxu0 0.0
          %652 = vmatprep.subr.mxu0 0.0
          %653 = vmatpush1.msra.mxu0 0.0
          %654 = vmatprep.subr.mxu0 0.0
          %655 = vmatpush1.msra.mxu0 0.0
          %656 = vmatprep.subr.mxu0 0.0
          %657 = vmatpush1.msra.mxu0 0.0
          %658 = vmatprep.subr.mxu0 0.0
          %659 = vmatpush1.msra.mxu0 0.0
          %660 = vmatprep.subr.mxu0 0.0
          %661 = vmatpush1.msra.mxu0 0.0
          %662 = vmatprep.subr.mxu0 0.0
          %663 = vmatpush1.msra.mxu0 0.0
          %664 = vmatprep.subr.mxu0 0.0
          %665 = vmatpush1.msra.mxu0 0.0
          %666 = vmatprep.subr.mxu0 0.0
          %667 = vmatpush1.msra.mxu0 0.0
          %668 = vmatprep.subr.mxu0 0.0
          %669 = vmatpush1.msra.mxu0 0.0
          %670 = vmatprep.subr.mxu0 0.0
          %671 = vmatpush1.msra.mxu0 0.0
          %672 = vmatprep.mubr.f32.mxu0 0.0
          %673 = vmatmul.mubr.f32.gmra.mrb[0].mxu0 %v606
          %v674 = vpop.f32.mrb[0].mxu0
          %v675 = vadd.f32 0.0, %v674
          %v676 = vpop.f32.mrb[0].mxu0
          %677 = vdwg.mxu0
          %v678 = vadd.f32 %v603, %v675
          %679 = vst.msk [vmem:[#allocation4] sm:$0xff] %vm489, %v678
          %680 = vst.msk [vmem:[#allocation2] sm:$0xff] %vm595, %v577
        $region44: #{head_forward.3} parent=31 // pred_fallthru
          _
        // Predicated region
        $region45: #{head_forward.3} parent=31 // pred_check
          %p681 = pneg %p282
        $region46: #{head_forward.3} parent=31 // pred_check_branch
          %683 = sbr.rel (%p681) target = $region48
        $region47: #{head_forward.3} parent=31 // pred_region
          %v684 = vld [vmem:[#allocation4] sm:$0xff]
          %v685 = vld [vmem:[#allocation3] sm:$0xff]
          %687 = vset.pattern.permute.xlu0 0
          %688 = vperm.xlu0 %687, %v685
          %v689 = vpop.permute.xlu0 %688
          %v691 = vrcp.pop %v689
          %v692 = vmul.f32 %v684, %v691
          %vm693 = vcmask 130048
          %694 = vst.msk [vmem:[%s252] sm:$0xff] %vm693, %v692
        $region48: #{head_forward.3} parent=31 // pred_fallthru
          _
        %s695 = sand.u32 %s138, 1
        %s696 = scalar_lea.sflag [#allocation6], %s695
        %s697 = sand.u32 %s138, 1
        %s698 = smul.addr %s697, 8
        %s699 = scalar_lea.vmem [#allocation5], %s698
        // Predicated region
        $region49: #{head_forward.3} parent=31 // pred_check
          %p700 = pneg %p148
        $region50: #{head_forward.3} parent=31 // pred_check_branch
          %702 = sbr.rel (%p700) target = $region52
        $region51: #{head_forward.3} parent=31 // pred_region
          %s704 = ssub.s32 128, 128
          %705 = vsyncadd %s696, %s704
          %s706 = sadd.s32 %s23, %s22
          %s707 = smul.addr %s706, 128
          %s708 = scalar_lea.hbm %s3, %s707
          %s710 = sshll.u32 %s699, 4
          %s711 = int_to_ptr.vmem [resolvable:$true] %s710
          %713 = dma.vmem_to_hbm [thread:$0]  %s711, 128, %s708, %s696
        $region52: #{head_forward.3} parent=31 // pred_fallthru
          _
      $region32: #{head_forward.3} parent=5 // pred_fallthru
        _
      %p714 = scmp.le.s32.totalorder 2, %s12
      // Predicated region
      $region53: #{head_forward.3} parent=5 // pred_check
        %p715 = pneg %p714
      $region54: #{head_forward.3} parent=5 // pred_check_branch
        %717 = sbr.rel (%p715) target = $region56
      $region55: #{head_forward.3} parent=5 // pred_region
        %s718 = ssub.s32 %s12, 2
        // Predicated region
        $region57: #{head_forward.3} parent=55 // pred_check
          %p719 = pneg %p154
        $region58: #{head_forward.3} parent=55 // pred_check_branch
          %721 = sbr.rel (%p719) target = $region60
        $region59: #{head_forward.3} parent=55 // pred_region
          %s722 = sand.u32 %s139, 1
          %s723 = scalar_lea.sflag [#allocation6], %s722
          %s724 = sand.u32 %s139, 1
          %s725 = smul.addr %s724, 8
          %s726 = scalar_lea.vmem [#allocation5], %s725
          %727 = dma.done %s723, 128
        $region60: #{head_forward.3} parent=55 // pred_fallthru
          _
      $region56: #{head_forward.3} parent=5 // pred_fallthru
        _
    $region6: #{head_forward.3} parent=1 // loop_footer
      %s16 = sadd.s32 1, %s12
    $region7: #{head_forward.3} parent=1 // loop_footer_branch
      %11 = sbr.rel target = $region3
    $region8: #{head_forward.3} parent=1 // loop_exit
      _
    %728 = vsyncpa [#allocation6], 1
    %s729 = scalar_lea.sflag [#allocation6], 1
    %730 = vsyncpa %s729, 1

</llo_original>
